<compile_context>
chip_gen: v7x
topology: tpu7x:2x2x1
jax: 0.10.0
libtpu: 0.0.40
codegen_flags: <defaults>
</compile_context>

<pallas_src>
import numpy as np
import jax
import jax.numpy as jnp
from jax import lax
from jax.experimental import pallas as pl
from jax.experimental.pallas import tpu as pltpu

EPS = 1e-5        # nn.BatchNorm2d default
C_PACK = 128      # lane-dense channel width for every in-kernel tensor
C1_SLOT = 32      # per-parity slot for layer-1 outputs (4 parities * 32 = 128)


def calculate_padding(kernel_size, stride):
    # TODO(synk): original helper not shown; assumed p = (k - stride) // 2.
    return (kernel_size - stride) // 2


# ---------------------------------------------------------------------------
# Parameter setup (deterministic, synthetic)
# ---------------------------------------------------------------------------
def init_params(key, config):
    feature_sizes = config['feature_sizes']
    kernel_sizes = config['kernel_size']
    stride = config['stride']
    layers = []
    for i in range(len(feature_sizes) - 1):
        cin = 6 if i == 0 else feature_sizes[i]
        cout = feature_sizes[i + 1]
        k = kernel_sizes[i]
        pad = calculate_padding(k, stride)
        key, kw_, kb_, kg_, kbe_, km_, kv_ = jax.random.split(key, 7)
        fan_in = k * k * cin
        w = jax.random.normal(kw_, (k, k, cin, cout), jnp.float32) / np.sqrt(fan_in)
        b = 0.05 * jax.random.normal(kb_, (cout,), jnp.float32)
        gamma = jax.random.uniform(kg_, (cout,), jnp.float32, 0.8, 1.2)
        beta = 0.1 * jax.random.normal(kbe_, (cout,), jnp.float32)
        mean = 0.1 * jax.random.normal(km_, (cout,), jnp.float32)
        var = jax.random.uniform(kv_, (cout,), jnp.float32, 0.5, 1.5)
        layers.append(dict(w=w, b=b, gamma=gamma, beta=beta, mean=mean, var=var,
                           stride=stride, pad=pad))
    # final: Conv2d(feature_sizes[-1], 1, (8, 7)) + Sigmoid
    cin = feature_sizes[-1]
    key, kw_, kb_ = jax.random.split(key, 3)
    wf = jax.random.normal(kw_, (8, 7, cin, 1), jnp.float32) / np.sqrt(8 * 7 * cin)
    bf = 0.05 * jax.random.normal(kb_, (1,), jnp.float32)
    return dict(hidden=layers, final=dict(w=wf, b=bf))


# ---------------------------------------------------------------------------
# Host-side weight preprocessing: fold BN, repack for the fused kernel
# ---------------------------------------------------------------------------
def _fold_bn(w, b, gamma, beta, mean, var):
    s = gamma / np.sqrt(var + EPS)
    return w * s, beta + s * (b - mean)


def _build_w1_big(w1f, c_in, c1):
    """Layer 1 (4x4, s=2, p=1) as a 2x2 stride-1 conv over the s2d-by-4 input.

    kin  = (sr*4 + sc)*c_in + c        (input sub-position + channel)
    kout = (po*2 + pc)*C1_SLOT + co    (output parity + channel)
    """
    out = np.zeros((2, 2, C_PACK, C_PACK), np.float32)
    for wr in range(2):
        for wc in range(2):
            for sr in range(4):
                for sc in range(4):
                    for po in range(2):
                        for pc in range(2):
                            di = 4 * wr + sr - 2 * po
                            dj = 4 * wc + sc - 2 * pc
                            if 0 <= di < 4 and 0 <= dj < 4:
                                kin = (sr * 4 + sc) * c_in
                                ko = (po * 2 + pc) * C1_SLOT
                                out[wr, wc, kin:kin + c_in, ko:ko + c1] = w1f[di, dj]
    return out


def _build_w2_big(w2f, c1, c2):
    """Layer 2 (4x4, s=2, p=1) as a 3x3 stride-1 conv over the s2d-by-2 layer-1 map."""
    out = np.zeros((3, 3, C_PACK, C_PACK), np.float32)
    for wr in range(3):
        for wc in range(3):
            for pi in range(2):
                for pj in range(2):
                    di = 2 * wr + pi - 1
                    dj = 2 * wc + pj - 1
                    if 0 <= di < 4 and 0 <= dj < 4:
                        kin = (pi * 2 + pj) * C1_SLOT
                        out[wr, wc, kin:kin + c1, 0:c2] = w2f[di, dj]
    return out


def _build_w3_stack(w3, c2):
    """Final (8,7) valid conv on the 8x8 map -> one (64,128) mask-weight per
    output column; row index r = oh*8 + ow."""
    out = np.zeros((2, 64, C_PACK), np.float32)
    for ow3 in range(2):
        for di in range(8):
            for j in range(8):
                dj = j - ow3
                if 0 <= dj < 7:
                    out[ow3, di * 8 + j, 0:c2] = w3[di, dj, :, 0]
    return out


def prepare_params(params):
    l1, l2 = params['hidden']
    w1 = np.asarray(l1['w'], np.float32)
    w2 = np.asarray(l2['w'], np.float32)
    w3 = np.asarray(params['final']['w'], np.float32)
    kh1, kw1, c_in, c1 = w1.shape
    kh2, kw2, c1b, c2 = w2.shape
    assert (kh1, kw1) == (4, 4) and (kh2, kw2) == (4, 4) and c1b == c1
    assert c_in <= 8 and c1 <= C1_SLOT and c2 <= C_PACK
    assert w3.shape == (8, 7, c2, 1)
    assert l1['stride'] == 2 and l2['stride'] == 2
    assert l1['pad'] == 1 and l2['pad'] == 1

    w1f, b1f = _fold_bn(w1, np.asarray(l1['b'], np.float32),
                        np.asarray(l1['gamma'], np.float32),
                        np.asarray(l1['beta'], np.float32),
                        np.asarray(l1['mean'], np.float32),
                        np.asarray(l1['var'], np.float32))
    w2f, b2f = _fold_bn(w2, np.asarray(l2['b'], np.float32),
                        np.asarray(l2['gamma'], np.float32),
                        np.asarray(l2['beta'], np.float32),
                        np.asarray(l2['mean'], np.float32),
                        np.asarray(l2['var'], np.float32))

    b1_big = np.zeros((1, C_PACK), np.float32)
    for p in range(4):
        b1_big[0, p * C1_SLOT:p * C1_SLOT + c1] = b1f
    b2_big = np.zeros((1, C_PACK), np.float32)
    b2_big[0, :c2] = b2f
    b3_big = np.tile(np.asarray(params['final']['b'], np.float32).reshape(1, 1), (1, 2))

    return dict(
        w1=jnp.asarray(_build_w1_big(w1f, c_in, c1), jnp.bfloat16),
        b1=jnp.asarray(b1_big),
        w2=jnp.asarray(_build_w2_big(w2f, c1, c2), jnp.bfloat16),
        b2=jnp.asarray(b2_big),
        w3=jnp.asarray(_build_w3_stack(w3, c2)),
        b3=jnp.asarray(b3_big),
    )


# ---------------------------------------------------------------------------
# The fused Pallas kernel (one grid step == one batch element)
# ---------------------------------------------------------------------------
def _frame_disc_kernel(x_ref, w1_ref, b1_ref, w2_ref, b2_ref, w3_ref, b3_ref, o_ref):
    xv = x_ref[0].astype(jnp.float32)                 # (9, 9, 128) s2d-by-4 input

    # ---- layer 1: Conv(4x4, s=2, p=1) + folded BN + LeakyReLU(0.2) ----------
    acc1 = jnp.zeros((64, C_PACK), jnp.float32)
    for wr in range(2):
        for wc in range(2):
            tap = xv[wr:wr + 8, wc:wc + 8, :].reshape(64, C_PACK)
            acc1 = acc1 + jnp.dot(tap.astype(jnp.bfloat16), w1_ref[wr, wc],
                                  preferred_element_type=jnp.float32)
    h1 = acc1 + b1_ref[...]
    h1 = jnp.where(h1 >= 0.0, h1, 0.2 * h1)           # (64, 128) f32
    h1 = h1.reshape(8, 8, C_PACK)                     # s2d-by-2 of the 16x16 map

    # zero-pad by one s2d cell on each side (== spatial pad of 1 pixel)
    zr = jnp.zeros((1, 8, C_PACK), jnp.float32)
    h1p = jnp.concatenate([zr, h1, zr], axis=0)       # (10, 8, 128)
    zc = jnp.zeros((10, 1, C_PACK), jnp.float32)
    h1p = jnp.concatenate([zc, h1p, zc], axis=1)      # (10, 10, 128)

    # ---- layer 2: Conv(4x4, s=2, p=1) + folded BN + LeakyReLU(0.2) ----------
    acc2 = jnp.zeros((64, C_PACK), jnp.float32)
    for wr in range(3):
        for wc in range(3):
            tap = h1p[wr:wr + 8, wc:wc + 8, :].reshape(64, C_PACK)
            acc2 = acc2 + jnp.dot(tap.astype(jnp.bfloat16), w2_ref[wr, wc],
                                  preferred_element_type=jnp.float32)
    h2 = acc2 + b2_ref[...]
    h2 = jnp.where(h2 >= 0.0, h2, 0.2 * h2)           # (64, 128) f32, row = oh*8+ow

    # ---- final: Conv(8x7, valid) + Sigmoid -> 2 values per batch element ----
    v0 = jnp.sum(jnp.sum(h2 * w3_ref[0], axis=1, keepdims=True), axis=0, keepdims=True)
    v1 = jnp.sum(jnp.sum(h2 * w3_ref[1], axis=1, keepdims=True), axis=0, keepdims=True)
    lane = lax.broadcasted_iota(jnp.int32, (1, 2), 1)
    logits = jnp.where(lane == 0, v0, v1) + b3_ref[...]
    o_ref[0] = jax.nn.sigmoid(logits)


# ---------------------------------------------------------------------------
# Forward pass wrapper
# ---------------------------------------------------------------------------
def frame_discriminator_forward(x_nhwc, starting_frame_nhwc, prep):
    N, H, W, C = x_nhwc.shape
    assert (H, W) == (32, 32), "fused kernel is specialized to 32x32 inputs"
    sf = jnp.broadcast_to(starting_frame_nhwc,
                          (N,) + starting_frame_nhwc.shape[1:])
    h0 = jnp.concatenate([x_nhwc, sf], axis=-1)                  # (N, 32, 32, 2C)
    c_tot = h0.shape[-1]
    assert 16 * c_tot <= C_PACK

    # Shifted zero-padded buffer big[a, b] = h0[a-1, b-1] (conv pad = 1),
    # rounded up to a multiple of 4, then space-to-depth by 4 and channel-pad.
    big = jnp.pad(h0, ((0, 0), (1, 3), (1, 3), (0, 0)))          # (N, 36, 36, 2C)
    s2d = big.reshape(N, 9, 4, 9, 4, c_tot)
    s2d = s2d.transpose(0, 1, 3, 2, 4, 5).reshape(N, 9, 9, 16 * c_tot)
    s2d = jnp.pad(s2d, ((0, 0), (0, 0), (0, 0), (0, C_PACK - 16 * c_tot)))
    x_in = s2d.astype(jnp.bfloat16)                              # (N, 9, 9, 128)

    out = pl.pallas_call(
        _frame_disc_kernel,
        out_shape=jax.ShapeDtypeStruct((N, 1, 2), jnp.float32),
        grid_spec=pltpu.PrefetchScalarGridSpec(
            num_scalar_prefetch=0,
            grid=(N,),
            in_specs=[
                pl.BlockSpec((1, 9, 9, C_PACK), lambda n: (n, 0, 0, 0)),
                pl.BlockSpec((2, 2, C_PACK, C_PACK), lambda n: (0, 0, 0, 0)),
                pl.BlockSpec((1, C_PACK), lambda n: (0, 0)),
                pl.BlockSpec((3, 3, C_PACK, C_PACK), lambda n: (0, 0, 0, 0)),
                pl.BlockSpec((1, C_PACK), lambda n: (0, 0)),
                pl.BlockSpec((2, 64, C_PACK), lambda n: (0, 0, 0)),
                pl.BlockSpec((1, 2), lambda n: (0, 0)),
            ],
            out_specs=pl.BlockSpec((1, 1, 2), lambda n: (n, 0, 0)),
        ),
        compiler_params=pltpu.CompilerParams(
            dimension_semantics=("parallel",),
            vmem_limit_bytes=32 * 1024 * 1024),
    )(x_in, prep['w1'], prep['b1'], prep['w2'], prep['b2'], prep['w3'], prep['b3'])

    return out.reshape(-1)   # == PyTorch x.view(-1) ordering (Cout == 1)


# ---------------------------------------------------------------------------
# Pure-JAX reference (internal correctness assert)
# ---------------------------------------------------------------------------
def reference_forward(x_nhwc, starting_frame_nhwc, params):
    sf = jnp.broadcast_to(starting_frame_nhwc,
                          (x_nhwc.shape[0],) + starting_frame_nhwc.shape[1:])
    h = jnp.concatenate([x_nhwc, sf], axis=-1)
    dn = ('NHWC', 'HWIO', 'NHWC')
    for layer in params['hidden']:
        s, p = layer['stride'], layer['pad']
        h = lax.conv_general_dilated(h, layer['w'], (s, s), [(p, p), (p, p)],
                                     dimension_numbers=dn) + layer['b']
        h = layer['gamma'] * (h - layer['mean']) / jnp.sqrt(layer['var'] + EPS) \
            + layer['beta']
        h = jnp.where(h >= 0.0, h, 0.2 * h)
    h = lax.conv_general_dilated(h, params['final']['w'], (1, 1), [(0, 0), (0, 0)],
                                 dimension_numbers=dn) + params['final']['b']
    return jax.nn.sigmoid(h).reshape(-1)


# ---------------------------------------------------------------------------
if __name__ == "__main__":
    # Small, consistent shapes: BS=2, C=3 (concat -> 6), 32x32 images.
    config = dict(feature_sizes=[6, 8, 16], kernel_size=[4, 4], stride=2)

    key = jax.random.PRNGKey(0)
    key, kx, ks = jax.random.split(key, 3)
    x_nchw = jax.random.normal(kx, (2, 3, 32, 32), jnp.float32)
    start_nchw = jax.random.normal(ks, (1, 3, 32, 32), jnp.float32)

    params = init_params(key, config)
    prep = prepare_params(params)

    # NCHW (PyTorch) -> NHWC (kernel layout)
    x_nhwc = jnp.transpose(x_nchw, (0, 2, 3, 1))
    start_nhwc = jnp.transpose(start_nchw, (0, 2, 3, 1))

    out = jax.block_until_ready(frame_discriminator_forward(x_nhwc, start_nhwc, prep))
    ref = jax.block_until_ready(reference_forward(x_nhwc, start_nhwc, params))

    assert out.shape == ref.shape
    # bf16 matmul operands (f32 accumulation) vs. full-f32 reference.
    assert np.allclose(np.asarray(out), np.asarray(ref), rtol=3e-2, atol=3e-2), (
        np.max(np.abs(np.asarray(out) - np.asarray(ref))))

    print("KERNEL_OK")
</pallas_src>

<mosaic_0001>
module attributes {stable_mosaic.version = 11 : i64} {
  func.func @_frame_disc_kernel(%arg0: i32, %arg1: memref<1x9x9x128xbf16, #tpu.memory_space<vmem>>, %arg2: memref<2x2x128x128xbf16, #tpu.memory_space<vmem>>, %arg3: memref<1x128xf32, #tpu.memory_space<vmem>>, %arg4: memref<3x3x128x128xbf16, #tpu.memory_space<vmem>>, %arg5: memref<1x128xf32, #tpu.memory_space<vmem>>, %arg6: memref<2x64x128xf32, #tpu.memory_space<vmem>>, %arg7: memref<1x2xf32, #tpu.memory_space<vmem>>, %arg8: memref<1x1x2xf32, #tpu.memory_space<vmem>>) attributes {dimension_semantics = [#tpu.dimension_semantics<parallel>], iteration_bounds = array<i64: 2>, scalar_prefetch = 0 : i64, scratch_operands = 0 : i64, tpu.core_type = #tpu.core_type<tc>, window_params = [{transform_indices = @transform_0, window_bounds = array<i64: 1, 9, 9, 128>}, {pipeline_mode = #tpu.pipeline_mode<synchronous>, transform_indices = @transform_1, window_bounds = array<i64: 2, 2, 128, 128>}, {pipeline_mode = #tpu.pipeline_mode<synchronous>, transform_indices = @transform_2, window_bounds = array<i64: 1, 128>}, {pipeline_mode = #tpu.pipeline_mode<synchronous>, transform_indices = @transform_3, window_bounds = array<i64: 3, 3, 128, 128>}, {pipeline_mode = #tpu.pipeline_mode<synchronous>, transform_indices = @transform_4, window_bounds = array<i64: 1, 128>}, {pipeline_mode = #tpu.pipeline_mode<synchronous>, transform_indices = @transform_5, window_bounds = array<i64: 2, 64, 128>}, {pipeline_mode = #tpu.pipeline_mode<synchronous>, transform_indices = @transform_6, window_bounds = array<i64: 1, 2>}, {transform_indices = @transform_7, window_bounds = array<i64: 1, 1, 2>}]} {
    %c0 = arith.constant 0 : index
    %c0_0 = arith.constant 0 : index
    %c0_1 = arith.constant 0 : index
    %c0_2 = arith.constant 0 : index
    %0 = vector.load %arg1[%c0, %c0_0, %c0_1, %c0_2] : memref<1x9x9x128xbf16, #tpu.memory_space<vmem>>, vector<1x9x9x128xbf16>
    %1 = vector.shape_cast %0 : vector<1x9x9x128xbf16> to vector<9x9x128xbf16>
    %2 = arith.extf %1 : vector<9x9x128xbf16> to vector<9x9x128xf32>
    %cst = arith.constant 0.000000e+00 : f32
    %3 = vector.broadcast %cst : f32 to vector<64x128xf32>
    %4 = vector.extract_strided_slice %2 {offsets = [0, 0, 0], sizes = [8, 8, 128], strides = [1, 1, 1]} : vector<9x9x128xf32> to vector<8x8x128xf32>
    %5 = vector.shape_cast %4 : vector<8x8x128xf32> to vector<64x128xf32>
    %6 = arith.truncf %5 : vector<64x128xf32> to vector<64x128xbf16>
    %c0_3 = arith.constant 0 : index
    %c0_4 = arith.constant 0 : index
    %c0_5 = arith.constant 0 : index
    %c0_6 = arith.constant 0 : index
    %7 = vector.load %arg2[%c0_3, %c0_4, %c0_5, %c0_6] : memref<2x2x128x128xbf16, #tpu.memory_space<vmem>>, vector<1x1x128x128xbf16>
    %8 = vector.shape_cast %7 : vector<1x1x128x128xbf16> to vector<128x128xbf16>
    %cst_7 = arith.constant dense<0.000000e+00> : vector<64x128xf32>
    %9 = tpu.matmul %6, %8, %cst_7 {dimension_numbers = #tpu.dot_dimension_numbers<[1], [0], [0], [1], [0, 0, 1, 1], [], []>} : vector<64x128xbf16>, vector<128x128xbf16>, vector<64x128xf32> -> vector<64x128xf32>
    %10 = arith.addf %3, %9 : vector<64x128xf32>
    %11 = vector.extract_strided_slice %2 {offsets = [0, 1, 0], sizes = [8, 8, 128], strides = [1, 1, 1]} : vector<9x9x128xf32> to vector<8x8x128xf32>
    %12 = vector.shape_cast %11 : vector<8x8x128xf32> to vector<64x128xf32>
    %13 = arith.truncf %12 : vector<64x128xf32> to vector<64x128xbf16>
    %c0_8 = arith.constant 0 : index
    %c1 = arith.constant 1 : index
    %c0_9 = arith.constant 0 : index
    %c0_10 = arith.constant 0 : index
    %14 = vector.load %arg2[%c0_8, %c1, %c0_9, %c0_10] : memref<2x2x128x128xbf16, #tpu.memory_space<vmem>>, vector<1x1x128x128xbf16>
    %15 = vector.shape_cast %14 : vector<1x1x128x128xbf16> to vector<128x128xbf16>
    %cst_11 = arith.constant dense<0.000000e+00> : vector<64x128xf32>
    %16 = tpu.matmul %13, %15, %cst_11 {dimension_numbers = #tpu.dot_dimension_numbers<[1], [0], [0], [1], [0, 0, 1, 1], [], []>} : vector<64x128xbf16>, vector<128x128xbf16>, vector<64x128xf32> -> vector<64x128xf32>
    %17 = arith.addf %10, %16 : vector<64x128xf32>
    %18 = vector.extract_strided_slice %2 {offsets = [1, 0, 0], sizes = [8, 8, 128], strides = [1, 1, 1]} : vector<9x9x128xf32> to vector<8x8x128xf32>
    %19 = vector.shape_cast %18 : vector<8x8x128xf32> to vector<64x128xf32>
    %20 = arith.truncf %19 : vector<64x128xf32> to vector<64x128xbf16>
    %c1_12 = arith.constant 1 : index
    %c0_13 = arith.constant 0 : index
    %c0_14 = arith.constant 0 : index
    %c0_15 = arith.constant 0 : index
    %21 = vector.load %arg2[%c1_12, %c0_13, %c0_14, %c0_15] : memref<2x2x128x128xbf16, #tpu.memory_space<vmem>>, vector<1x1x128x128xbf16>
    %22 = vector.shape_cast %21 : vector<1x1x128x128xbf16> to vector<128x128xbf16>
    %cst_16 = arith.constant dense<0.000000e+00> : vector<64x128xf32>
    %23 = tpu.matmul %20, %22, %cst_16 {dimension_numbers = #tpu.dot_dimension_numbers<[1], [0], [0], [1], [0, 0, 1, 1], [], []>} : vector<64x128xbf16>, vector<128x128xbf16>, vector<64x128xf32> -> vector<64x128xf32>
    %24 = arith.addf %17, %23 : vector<64x128xf32>
    %25 = vector.extract_strided_slice %2 {offsets = [1, 1, 0], sizes = [8, 8, 128], strides = [1, 1, 1]} : vector<9x9x128xf32> to vector<8x8x128xf32>
    %26 = vector.shape_cast %25 : vector<8x8x128xf32> to vector<64x128xf32>
    %27 = arith.truncf %26 : vector<64x128xf32> to vector<64x128xbf16>
    %c1_17 = arith.constant 1 : index
    %c1_18 = arith.constant 1 : index
    %c0_19 = arith.constant 0 : index
    %c0_20 = arith.constant 0 : index
    %28 = vector.load %arg2[%c1_17, %c1_18, %c0_19, %c0_20] : memref<2x2x128x128xbf16, #tpu.memory_space<vmem>>, vector<1x1x128x128xbf16>
    %29 = vector.shape_cast %28 : vector<1x1x128x128xbf16> to vector<128x128xbf16>
    %cst_21 = arith.constant dense<0.000000e+00> : vector<64x128xf32>
    %30 = tpu.matmul %27, %29, %cst_21 {dimension_numbers = #tpu.dot_dimension_numbers<[1], [0], [0], [1], [0, 0, 1, 1], [], []>} : vector<64x128xbf16>, vector<128x128xbf16>, vector<64x128xf32> -> vector<64x128xf32>
    %31 = arith.addf %24, %30 : vector<64x128xf32>
    %c0_22 = arith.constant 0 : index
    %c0_23 = arith.constant 0 : index
    %32 = vector.load %arg3[%c0_22, %c0_23] : memref<1x128xf32, #tpu.memory_space<vmem>>, vector<1x128xf32>
    %33 = vector.broadcast %32 : vector<1x128xf32> to vector<64x128xf32>
    %34 = arith.addf %31, %33 : vector<64x128xf32>
    %cst_24 = arith.constant 0.000000e+00 : f32
    %35 = vector.broadcast %cst_24 : f32 to vector<64x128xf32>
    %36 = arith.cmpf oge, %34, %35 : vector<64x128xf32>
    %cst_25 = arith.constant 2.000000e-01 : f32
    %37 = vector.broadcast %cst_25 : f32 to vector<64x128xf32>
    %38 = arith.mulf %37, %34 : vector<64x128xf32>
    %39 = arith.select %36, %34, %38 : vector<64x128xi1>, vector<64x128xf32>
    %40 = vector.shape_cast %39 : vector<64x128xf32> to vector<8x8x128xf32>
    %cst_26 = arith.constant 0.000000e+00 : f32
    %41 = vector.broadcast %cst_26 : f32 to vector<1x8x128xf32>
    %42 = tpu.concatenate %41, %40, %41 in 0 : vector<1x8x128xf32>, vector<8x8x128xf32>, vector<1x8x128xf32> -> vector<10x8x128xf32>
    %cst_27 = arith.constant 0.000000e+00 : f32
    %43 = vector.broadcast %cst_27 : f32 to vector<10x1x128xf32>
    %44 = tpu.concatenate %43, %42, %43 in 1 : vector<10x1x128xf32>, vector<10x8x128xf32>, vector<10x1x128xf32> -> vector<10x10x128xf32>
    %cst_28 = arith.constant 0.000000e+00 : f32
    %45 = vector.broadcast %cst_28 : f32 to vector<64x128xf32>
    %46 = vector.extract_strided_slice %44 {offsets = [0, 0, 0], sizes = [8, 8, 128], strides = [1, 1, 1]} : vector<10x10x128xf32> to vector<8x8x128xf32>
    %47 = vector.shape_cast %46 : vector<8x8x128xf32> to vector<64x128xf32>
    %48 = arith.truncf %47 : vector<64x128xf32> to vector<64x128xbf16>
    %c0_29 = arith.constant 0 : index
    %c0_30 = arith.constant 0 : index
    %c0_31 = arith.constant 0 : index
    %c0_32 = arith.constant 0 : index
    %49 = vector.load %arg4[%c0_29, %c0_30, %c0_31, %c0_32] : memref<3x3x128x128xbf16, #tpu.memory_space<vmem>>, vector<1x1x128x128xbf16>
    %50 = vector.shape_cast %49 : vector<1x1x128x128xbf16> to vector<128x128xbf16>
    %cst_33 = arith.constant dense<0.000000e+00> : vector<64x128xf32>
    %51 = tpu.matmul %48, %50, %cst_33 {dimension_numbers = #tpu.dot_dimension_numbers<[1], [0], [0], [1], [0, 0, 1, 1], [], []>} : vector<64x128xbf16>, vector<128x128xbf16>, vector<64x128xf32> -> vector<64x128xf32>
    %52 = arith.addf %45, %51 : vector<64x128xf32>
    %53 = vector.extract_strided_slice %44 {offsets = [0, 1, 0], sizes = [8, 8, 128], strides = [1, 1, 1]} : vector<10x10x128xf32> to vector<8x8x128xf32>
    %54 = vector.shape_cast %53 : vector<8x8x128xf32> to vector<64x128xf32>
    %55 = arith.truncf %54 : vector<64x128xf32> to vector<64x128xbf16>
    %c0_34 = arith.constant 0 : index
    %c1_35 = arith.constant 1 : index
    %c0_36 = arith.constant 0 : index
    %c0_37 = arith.constant 0 : index
    %56 = vector.load %arg4[%c0_34, %c1_35, %c0_36, %c0_37] : memref<3x3x128x128xbf16, #tpu.memory_space<vmem>>, vector<1x1x128x128xbf16>
    %57 = vector.shape_cast %56 : vector<1x1x128x128xbf16> to vector<128x128xbf16>
    %cst_38 = arith.constant dense<0.000000e+00> : vector<64x128xf32>
    %58 = tpu.matmul %55, %57, %cst_38 {dimension_numbers = #tpu.dot_dimension_numbers<[1], [0], [0], [1], [0, 0, 1, 1], [], []>} : vector<64x128xbf16>, vector<128x128xbf16>, vector<64x128xf32> -> vector<64x128xf32>
    %59 = arith.addf %52, %58 : vector<64x128xf32>
    %60 = vector.extract_strided_slice %44 {offsets = [0, 2, 0], sizes = [8, 8, 128], strides = [1, 1, 1]} : vector<10x10x128xf32> to vector<8x8x128xf32>
    %61 = vector.shape_cast %60 : vector<8x8x128xf32> to vector<64x128xf32>
    %62 = arith.truncf %61 : vector<64x128xf32> to vector<64x128xbf16>
    %c0_39 = arith.constant 0 : index
    %c2 = arith.constant 2 : index
    %c0_40 = arith.constant 0 : index
    %c0_41 = arith.constant 0 : index
    %63 = vector.load %arg4[%c0_39, %c2, %c0_40, %c0_41] : memref<3x3x128x128xbf16, #tpu.memory_space<vmem>>, vector<1x1x128x128xbf16>
    %64 = vector.shape_cast %63 : vector<1x1x128x128xbf16> to vector<128x128xbf16>
    %cst_42 = arith.constant dense<0.000000e+00> : vector<64x128xf32>
    %65 = tpu.matmul %62, %64, %cst_42 {dimension_numbers = #tpu.dot_dimension_numbers<[1], [0], [0], [1], [0, 0, 1, 1], [], []>} : vector<64x128xbf16>, vector<128x128xbf16>, vector<64x128xf32> -> vector<64x128xf32>
    %66 = arith.addf %59, %65 : vector<64x128xf32>
    %67 = vector.extract_strided_slice %44 {offsets = [1, 0, 0], sizes = [8, 8, 128], strides = [1, 1, 1]} : vector<10x10x128xf32> to vector<8x8x128xf32>
    %68 = vector.shape_cast %67 : vector<8x8x128xf32> to vector<64x128xf32>
    %69 = arith.truncf %68 : vector<64x128xf32> to vector<64x128xbf16>
    %c1_43 = arith.constant 1 : index
    %c0_44 = arith.constant 0 : index
    %c0_45 = arith.constant 0 : index
    %c0_46 = arith.constant 0 : index
    %70 = vector.load %arg4[%c1_43, %c0_44, %c0_45, %c0_46] : memref<3x3x128x128xbf16, #tpu.memory_space<vmem>>, vector<1x1x128x128xbf16>
    %71 = vector.shape_cast %70 : vector<1x1x128x128xbf16> to vector<128x128xbf16>
    %cst_47 = arith.constant dense<0.000000e+00> : vector<64x128xf32>
    %72 = tpu.matmul %69, %71, %cst_47 {dimension_numbers = #tpu.dot_dimension_numbers<[1], [0], [0], [1], [0, 0, 1, 1], [], []>} : vector<64x128xbf16>, vector<128x128xbf16>, vector<64x128xf32> -> vector<64x128xf32>
    %73 = arith.addf %66, %72 : vector<64x128xf32>
    %74 = vector.extract_strided_slice %44 {offsets = [1, 1, 0], sizes = [8, 8, 128], strides = [1, 1, 1]} : vector<10x10x128xf32> to vector<8x8x128xf32>
    %75 = vector.shape_cast %74 : vector<8x8x128xf32> to vector<64x128xf32>
    %76 = arith.truncf %75 : vector<64x128xf32> to vector<64x128xbf16>
    %c1_48 = arith.constant 1 : index
    %c1_49 = arith.constant 1 : index
    %c0_50 = arith.constant 0 : index
    %c0_51 = arith.constant 0 : index
    %77 = vector.load %arg4[%c1_48, %c1_49, %c0_50, %c0_51] : memref<3x3x128x128xbf16, #tpu.memory_space<vmem>>, vector<1x1x128x128xbf16>
    %78 = vector.shape_cast %77 : vector<1x1x128x128xbf16> to vector<128x128xbf16>
    %cst_52 = arith.constant dense<0.000000e+00> : vector<64x128xf32>
    %79 = tpu.matmul %76, %78, %cst_52 {dimension_numbers = #tpu.dot_dimension_numbers<[1], [0], [0], [1], [0, 0, 1, 1], [], []>} : vector<64x128xbf16>, vector<128x128xbf16>, vector<64x128xf32> -> vector<64x128xf32>
    %80 = arith.addf %73, %79 : vector<64x128xf32>
    %81 = vector.extract_strided_slice %44 {offsets = [1, 2, 0], sizes = [8, 8, 128], strides = [1, 1, 1]} : vector<10x10x128xf32> to vector<8x8x128xf32>
    %82 = vector.shape_cast %81 : vector<8x8x128xf32> to vector<64x128xf32>
    %83 = arith.truncf %82 : vector<64x128xf32> to vector<64x128xbf16>
    %c1_53 = arith.constant 1 : index
    %c2_54 = arith.constant 2 : index
    %c0_55 = arith.constant 0 : index
    %c0_56 = arith.constant 0 : index
    %84 = vector.load %arg4[%c1_53, %c2_54, %c0_55, %c0_56] : memref<3x3x128x128xbf16, #tpu.memory_space<vmem>>, vector<1x1x128x128xbf16>
    %85 = vector.shape_cast %84 : vector<1x1x128x128xbf16> to vector<128x128xbf16>
    %cst_57 = arith.constant dense<0.000000e+00> : vector<64x128xf32>
    %86 = tpu.matmul %83, %85, %cst_57 {dimension_numbers = #tpu.dot_dimension_numbers<[1], [0], [0], [1], [0, 0, 1, 1], [], []>} : vector<64x128xbf16>, vector<128x128xbf16>, vector<64x128xf32> -> vector<64x128xf32>
    %87 = arith.addf %80, %86 : vector<64x128xf32>
    %88 = vector.extract_strided_slice %44 {offsets = [2, 0, 0], sizes = [8, 8, 128], strides = [1, 1, 1]} : vector<10x10x128xf32> to vector<8x8x128xf32>
    %89 = vector.shape_cast %88 : vector<8x8x128xf32> to vector<64x128xf32>
    %90 = arith.truncf %89 : vector<64x128xf32> to vector<64x128xbf16>
    %c2_58 = arith.constant 2 : index
    %c0_59 = arith.constant 0 : index
    %c0_60 = arith.constant 0 : index
    %c0_61 = arith.constant 0 : index
    %91 = vector.load %arg4[%c2_58, %c0_59, %c0_60, %c0_61] : memref<3x3x128x128xbf16, #tpu.memory_space<vmem>>, vector<1x1x128x128xbf16>
    %92 = vector.shape_cast %91 : vector<1x1x128x128xbf16> to vector<128x128xbf16>
    %cst_62 = arith.constant dense<0.000000e+00> : vector<64x128xf32>
    %93 = tpu.matmul %90, %92, %cst_62 {dimension_numbers = #tpu.dot_dimension_numbers<[1], [0], [0], [1], [0, 0, 1, 1], [], []>} : vector<64x128xbf16>, vector<128x128xbf16>, vector<64x128xf32> -> vector<64x128xf32>
    %94 = arith.addf %87, %93 : vector<64x128xf32>
    %95 = vector.extract_strided_slice %44 {offsets = [2, 1, 0], sizes = [8, 8, 128], strides = [1, 1, 1]} : vector<10x10x128xf32> to vector<8x8x128xf32>
    %96 = vector.shape_cast %95 : vector<8x8x128xf32> to vector<64x128xf32>
    %97 = arith.truncf %96 : vector<64x128xf32> to vector<64x128xbf16>
    %c2_63 = arith.constant 2 : index
    %c1_64 = arith.constant 1 : index
    %c0_65 = arith.constant 0 : index
    %c0_66 = arith.constant 0 : index
    %98 = vector.load %arg4[%c2_63, %c1_64, %c0_65, %c0_66] : memref<3x3x128x128xbf16, #tpu.memory_space<vmem>>, vector<1x1x128x128xbf16>
    %99 = vector.shape_cast %98 : vector<1x1x128x128xbf16> to vector<128x128xbf16>
    %cst_67 = arith.constant dense<0.000000e+00> : vector<64x128xf32>
    %100 = tpu.matmul %97, %99, %cst_67 {dimension_numbers = #tpu.dot_dimension_numbers<[1], [0], [0], [1], [0, 0, 1, 1], [], []>} : vector<64x128xbf16>, vector<128x128xbf16>, vector<64x128xf32> -> vector<64x128xf32>
    %101 = arith.addf %94, %100 : vector<64x128xf32>
    %102 = vector.extract_strided_slice %44 {offsets = [2, 2, 0], sizes = [8, 8, 128], strides = [1, 1, 1]} : vector<10x10x128xf32> to vector<8x8x128xf32>
    %103 = vector.shape_cast %102 : vector<8x8x128xf32> to vector<64x128xf32>
    %104 = arith.truncf %103 : vector<64x128xf32> to vector<64x128xbf16>
    %c2_68 = arith.constant 2 : index
    %c2_69 = arith.constant 2 : index
    %c0_70 = arith.constant 0 : index
    %c0_71 = arith.constant 0 : index
    %105 = vector.load %arg4[%c2_68, %c2_69, %c0_70, %c0_71] : memref<3x3x128x128xbf16, #tpu.memory_space<vmem>>, vector<1x1x128x128xbf16>
    %106 = vector.shape_cast %105 : vector<1x1x128x128xbf16> to vector<128x128xbf16>
    %cst_72 = arith.constant dense<0.000000e+00> : vector<64x128xf32>
    %107 = tpu.matmul %104, %106, %cst_72 {dimension_numbers = #tpu.dot_dimension_numbers<[1], [0], [0], [1], [0, 0, 1, 1], [], []>} : vector<64x128xbf16>, vector<128x128xbf16>, vector<64x128xf32> -> vector<64x128xf32>
    %108 = arith.addf %101, %107 : vector<64x128xf32>
    %c0_73 = arith.constant 0 : index
    %c0_74 = arith.constant 0 : index
    %109 = vector.load %arg5[%c0_73, %c0_74] : memref<1x128xf32, #tpu.memory_space<vmem>>, vector<1x128xf32>
    %110 = vector.broadcast %109 : vector<1x128xf32> to vector<64x128xf32>
    %111 = arith.addf %108, %110 : vector<64x128xf32>
    %cst_75 = arith.constant 0.000000e+00 : f32
    %112 = vector.broadcast %cst_75 : f32 to vector<64x128xf32>
    %113 = arith.cmpf oge, %111, %112 : vector<64x128xf32>
    %cst_76 = arith.constant 2.000000e-01 : f32
    %114 = vector.broadcast %cst_76 : f32 to vector<64x128xf32>
    %115 = arith.mulf %114, %111 : vector<64x128xf32>
    %116 = arith.select %113, %111, %115 : vector<64x128xi1>, vector<64x128xf32>
    %c0_77 = arith.constant 0 : index
    %c0_78 = arith.constant 0 : index
    %c0_79 = arith.constant 0 : index
    %117 = vector.load %arg6[%c0_77, %c0_78, %c0_79] : memref<2x64x128xf32, #tpu.memory_space<vmem>>, vector<1x64x128xf32>
    %118 = vector.shape_cast %117 : vector<1x64x128xf32> to vector<64x128xf32>
    %119 = arith.mulf %116, %118 : vector<64x128xf32>
    %cst_80 = arith.constant dense<0.000000e+00> : vector<64xf32>
    %120 = vector.multi_reduction <add>, %119, %cst_80 [1] : vector<64x128xf32> to vector<64xf32>
    %121 = vector.shape_cast %120 : vector<64xf32> to vector<64x1xf32>
    %cst_81 = arith.constant dense<0.000000e+00> : vector<1xf32>
    %122 = vector.multi_reduction <add>, %121, %cst_81 [0] : vector<64x1xf32> to vector<1xf32>
    %123 = vector.shape_cast %122 : vector<1xf32> to vector<1x1xf32>
    %c1_82 = arith.constant 1 : index
    %c0_83 = arith.constant 0 : index
    %c0_84 = arith.constant 0 : index
    %124 = vector.load %arg6[%c1_82, %c0_83, %c0_84] : memref<2x64x128xf32, #tpu.memory_space<vmem>>, vector<1x64x128xf32>
    %125 = vector.shape_cast %124 : vector<1x64x128xf32> to vector<64x128xf32>
    %126 = arith.mulf %116, %125 : vector<64x128xf32>
    %cst_85 = arith.constant dense<0.000000e+00> : vector<64xf32>
    %127 = vector.multi_reduction <add>, %126, %cst_85 [1] : vector<64x128xf32> to vector<64xf32>
    %128 = vector.shape_cast %127 : vector<64xf32> to vector<64x1xf32>
    %cst_86 = arith.constant dense<0.000000e+00> : vector<1xf32>
    %129 = vector.multi_reduction <add>, %128, %cst_86 [0] : vector<64x1xf32> to vector<1xf32>
    %130 = vector.shape_cast %129 : vector<1xf32> to vector<1x1xf32>
    %131 = tpu.iota {dimensions = array<i32: 1>} : vector<1x2xi32>
    %c0_i32 = arith.constant 0 : i32
    %132 = vector.broadcast %c0_i32 : i32 to vector<1x2xi32>
    %133 = arith.cmpi eq, %131, %132 : vector<1x2xi32>
    %134 = vector.shape_cast %123 : vector<1x1xf32> to vector<1x1xf32>
    %135 = vector.broadcast %134 : vector<1x1xf32> to vector<1x2xf32>
    %136 = vector.shape_cast %130 : vector<1x1xf32> to vector<1x1xf32>
    %137 = vector.broadcast %136 : vector<1x1xf32> to vector<1x2xf32>
    %138 = arith.select %133, %135, %137 : vector<1x2xi1>, vector<1x2xf32>
    %c0_87 = arith.constant 0 : index
    %c0_88 = arith.constant 0 : index
    %139 = vector.load %arg7[%c0_87, %c0_88] : memref<1x2xf32, #tpu.memory_space<vmem>>, vector<1x2xf32>
    %140 = arith.addf %138, %139 : vector<1x2xf32>
    %141 = arith.negf %140 : vector<1x2xf32>
    %142 = math.exp %141 : vector<1x2xf32>
    %cst_89 = arith.constant 1.000000e+00 : f32
    %143 = vector.broadcast %cst_89 : f32 to vector<1x2xf32>
    %144 = arith.addf %143, %142 : vector<1x2xf32>
    %145 = arith.divf %143, %144 : vector<1x2xf32>
    %c0_90 = arith.constant 0 : index
    %c0_91 = arith.constant 0 : index
    %c0_92 = arith.constant 0 : index
    %146 = vector.load %arg8[%c0_90, %c0_91, %c0_92] : memref<1x1x2xf32, #tpu.memory_space<vmem>>, vector<1x1x2xf32>
    %147 = vector.shape_cast %146 : vector<1x1x2xf32> to vector<1x2xf32>
    %148 = vector.shape_cast %145 : vector<1x2xf32> to vector<1x1x2xf32>
    tpu.vector_store %arg8[%c0_90, %c0_91, %c0_92], %148 {strides = array<i32>} : memref<1x1x2xf32, #tpu.memory_space<vmem>>, vector<1x1x2xf32>,
    return
  }
  func.func @transform_0(%arg0: i32) -> (i32, i32, i32, i32) {
    %c0_i32 = arith.constant 0 : i32
    %c0_i32_0 = arith.constant 0 : i32
    %c0_i32_1 = arith.constant 0 : i32
    %c0_i32_2 = arith.constant 0 : i32
    return %arg0, %c0_i32, %c0_i32_0, %c0_i32_1 : i32, i32, i32, i32
  }
  func.func @transform_1(%arg0: i32) -> (i32, i32, i32, i32) {
    %c0_i32 = arith.constant 0 : i32
    %c0_i32_0 = arith.constant 0 : i32
    %c0_i32_1 = arith.constant 0 : i32
    %c0_i32_2 = arith.constant 0 : i32
    %c0_i32_3 = arith.constant 0 : i32
    return %c0_i32, %c0_i32_0, %c0_i32_1, %c0_i32_2 : i32, i32, i32, i32
  }
  func.func @transform_2(%arg0: i32) -> (i32, i32) {
    %c0_i32 = arith.constant 0 : i32
    %c0_i32_0 = arith.constant 0 : i32
    %c0_i32_1 = arith.constant 0 : i32
    return %c0_i32, %c0_i32_0 : i32, i32
  }
  func.func @transform_3(%arg0: i32) -> (i32, i32, i32, i32) {
    %c0_i32 = arith.constant 0 : i32
    %c0_i32_0 = arith.constant 0 : i32
    %c0_i32_1 = arith.constant 0 : i32
    %c0_i32_2 = arith.constant 0 : i32
    %c0_i32_3 = arith.constant 0 : i32
    return %c0_i32, %c0_i32_0, %c0_i32_1, %c0_i32_2 : i32, i32, i32, i32
  }
  func.func @transform_4(%arg0: i32) -> (i32, i32) {
    %c0_i32 = arith.constant 0 : i32
    %c0_i32_0 = arith.constant 0 : i32
    %c0_i32_1 = arith.constant 0 : i32
    return %c0_i32, %c0_i32_0 : i32, i32
  }
  func.func @transform_5(%arg0: i32) -> (i32, i32, i32) {
    %c0_i32 = arith.constant 0 : i32
    %c0_i32_0 = arith.constant 0 : i32
    %c0_i32_1 = arith.constant 0 : i32
    %c0_i32_2 = arith.constant 0 : i32
    return %c0_i32, %c0_i32_0, %c0_i32_1 : i32, i32, i32
  }
  func.func @transform_6(%arg0: i32) -> (i32, i32) {
    %c0_i32 = arith.constant 0 : i32
    %c0_i32_0 = arith.constant 0 : i32
    %c0_i32_1 = arith.constant 0 : i32
    return %c0_i32, %c0_i32_0 : i32, i32
  }
  func.func @transform_7(%arg0: i32) -> (i32, i32, i32) {
    %c0_i32 = arith.constant 0 : i32
    %c0_i32_0 = arith.constant 0 : i32
    %c0_i32_1 = arith.constant 0 : i32
    return %arg0, %c0_i32, %c0_i32_0 : i32, i32, i32
  }
}

</mosaic_0001>

<llo_original>
// kernel: tpu_custom_call.1
$region0: #{tpu_custom_call.1}
  #allocation0 [shape = 'u32[]', space=smem, size = 0x4, offset = 0x4, fixed_abs, tag = 'smem constant byte address 0x4 - core index']
  #allocation1 [shape = 'u32[144,128]{1,0:T(1,128)}', space=vmem, size = 0x12000, scoped, tag = 'internal scratch']
  %s0 = inlined_call_operand.vmem [shape: bf16[2,9,9,128], index: 0, kind: input, shape index: {}]
  %s1 = inlined_call_operand.hbm [shape: bf16[2,2,128,128], index: 1, kind: input, shape index: {}]
  %s2 = inlined_call_operand.vmem [shape: f32[1,128], index: 2, kind: input, shape index: {}]
  %s3 = inlined_call_operand.hbm [shape: bf16[3,3,128,128], index: 3, kind: input, shape index: {}]
  %s4 = inlined_call_operand.vmem [shape: f32[1,128], index: 4, kind: input, shape index: {}]
  %s5 = inlined_call_operand.vmem [shape: f32[2,64,128], index: 5, kind: input, shape index: {}]
  %s6 = inlined_call_operand.vmem [shape: f32[1,2], index: 6, kind: input, shape index: {}]
  %s7 = inlined_call_operand.hbm [shape: f32[2,1,2], index: 7, kind: output, shape index: {}]
  %s8 = sld [smem:[#allocation0]]
  $region69: #{tpu_custom_call.1} parent=0
    _
  %s10 = ssub.s32 1, %s8
  %s11 = scalar_select 0, %s10, %s8
  $region1: #{tpu_custom_call.1} parent=0
    #allocation2 [shape = 'u8[131072]{0}', space=vmem, size = 0x20000, scoped, tag = 'input window, operand 1, single buffered']
    #allocation3 [shape = 's32[2]{0}', space=sflag, size = 0x8, scoped, tag = 'scoped memory for tpu_custom_call.1']
    #allocation4 [shape = 's32[2]{0}', space=sflag, size = 0x8, scoped, tag = 'scoped memory for tpu_custom_call.1']
    #allocation5 [shape = 'u8[294912]{0}', space=vmem, size = 0x48000, scoped, tag = 'input window, operand 3, single buffered']
    #allocation6 [shape = 's32[1]{0}', space=sflag, size = 0x4, scoped, tag = 'scoped memory for tpu_custom_call.1']
    #allocation7 [shape = 'u8[1024]{0}', space=vmem, size = 0x400, scoped, tag = 'output window, operand 0']
    %12 = vsyncpa [#allocation3], 0
    %13 = vsyncpa [#allocation6], 0
    %14 = vsyncpa [#allocation4], 0
    %s15 = scalar_lea.sflag [#allocation4], 1
    %16 = vsyncpa %s15, 0
    loop: start=0, step=1, limit=4
    $region2: #{tpu_custom_call.1} parent=1 // loop_pre_header
      _
    $region3: #{tpu_custom_call.1} parent=1 // loop_header
      %s18 = sphi 0, %s22
      %p19 = scmp.ge.s32.totalorder %s18, 4
      %s28 = sphi 0, %s30
      %s31 = sphi 0, %s28
      %s32 = sphi 0, %s31
      %s48 = sphi 0, %s32
      %s52 = sphi 0, %s52
      %s54 = sphi 0, %s52
      %s55 = sphi 0, %s54
      %s69 = sphi 0, %s55
      %s73 = sphi 0, %s73
      %s75 = sphi 0, %s73
      %s76 = sphi 0, %s75
      %s90 = sphi 0, %s76
      %s94 = sphi 0, %s94
      %s96 = sphi 0, %s94
      %s97 = sphi 0, %s96
      %s111 = sphi 0, %s97
      %s115 = sphi 0, %s115
      %s117 = sphi 0, %s115
      %s118 = sphi 0, %s117
      %s132 = sphi 0, %s118
      %s136 = sphi 0, %s136
      %s138 = sphi 0, %s136
      %s139 = sphi 0, %s138
      %s153 = sphi 0, %s139
      %s157 = sphi 0, %s157
      %s159 = sphi 0, %s157
      %s160 = sphi 0, %s159
      %s174 = sphi 0, %s160
      %s180 = sphi 0, %s182
      %s183 = sphi 0, %s180
      %s184 = sphi 0, %s183
      %s200 = sphi 0, %s184
    $region4: #{tpu_custom_call.1} parent=1 // loop_header_branch
      %21 = sbr.rel (%p19) target = $region8
    $region5: #{tpu_custom_call.1} parent=1 // loop_body
      %s23 = ssub.s32 %s18, 1
      %s24 = ssub.s32 %s18, 2
      %s25 = sadd.s32 %s18, 1
      %s26 = ssub.s32 %s18, %s25
      %p27 = scmp.eq.s32.totalorder %s26, 0
      %s29 = sadd.s32 %s28, 1
      %s30 = scalar_select %p27, %s28, %s29
      %p33 = pneg %p27
      %p34 = scmp.eq.s32.totalorder %s18, 1
      %p35 = por %p33, %p34
      %p36 = scmp.ne.s32.totalorder %s28, %s31
      %p37 = scmp.eq.s32.totalorder %s18, 0
      %p38 = por %p36, %p37
      %p39 = scmp.ne.s32.totalorder %s28, %s31
      %p40 = scmp.eq.s32.totalorder %s23, 1
      %p41 = por %p39, %p40
      %p42 = scmp.ne.s32.totalorder %s31, %s32
      %p43 = scmp.eq.s32.totalorder %s23, 0
      %p44 = por %p42, %p43
      %p45 = scmp.ne.s32.totalorder %s31, %s32
      %p46 = scmp.eq.s32.totalorder %s24, 1
      %p47 = por %p45, %p46
      %p49 = scmp.ne.s32.totalorder %s32, %s48
      %p50 = scmp.eq.s32.totalorder %s24, 0
      %p51 = por %p49, %p50
      %s53 = sadd.s32 %s52, 1
      %p56 = scmp.eq.s32.totalorder %s18, 1
      %p57 = scmp.ne.s32.totalorder %s52, %s54
      %p58 = scmp.eq.s32.totalorder %s18, 0
      %p59 = por %p57, %p58
      %p60 = scmp.ne.s32.totalorder %s52, %s54
      %p61 = scmp.eq.s32.totalorder %s23, 1
      %p62 = por %p60, %p61
      %p63 = scmp.ne.s32.totalorder %s54, %s55
      %p64 = scmp.eq.s32.totalorder %s23, 0
      %p65 = por %p63, %p64
      %p66 = scmp.ne.s32.totalorder %s54, %s55
      %p67 = scmp.eq.s32.totalorder %s24, 1
      %p68 = por %p66, %p67
      %p70 = scmp.ne.s32.totalorder %s55, %s69
      %p71 = scmp.eq.s32.totalorder %s24, 0
      %p72 = por %p70, %p71
      %s74 = sadd.s32 %s73, 1
      %p77 = scmp.eq.s32.totalorder %s18, 1
      %p78 = scmp.ne.s32.totalorder %s73, %s75
      %p79 = scmp.eq.s32.totalorder %s18, 0
      %p80 = por %p78, %p79
      %p81 = scmp.ne.s32.totalorder %s73, %s75
      %p82 = scmp.eq.s32.totalorder %s23, 1
      %p83 = por %p81, %p82
      %p84 = scmp.ne.s32.totalorder %s75, %s76
      %p85 = scmp.eq.s32.totalorder %s23, 0
      %p86 = por %p84, %p85
      %p87 = scmp.ne.s32.totalorder %s75, %s76
      %p88 = scmp.eq.s32.totalorder %s24, 1
      %p89 = por %p87, %p88
      %p91 = scmp.ne.s32.totalorder %s76, %s90
      %p92 = scmp.eq.s32.totalorder %s24, 0
      %p93 = por %p91, %p92
      %s95 = sadd.s32 %s94, 1
      %p98 = scmp.eq.s32.totalorder %s18, 1
      %p99 = scmp.ne.s32.totalorder %s94, %s96
      %p100 = scmp.eq.s32.totalorder %s18, 0
      %p101 = por %p99, %p100
      %p102 = scmp.ne.s32.totalorder %s94, %s96
      %p103 = scmp.eq.s32.totalorder %s23, 1
      %p104 = por %p102, %p103
      %p105 = scmp.ne.s32.totalorder %s96, %s97
      %p106 = scmp.eq.s32.totalorder %s23, 0
      %p107 = por %p105, %p106
      %p108 = scmp.ne.s32.totalorder %s96, %s97
      %p109 = scmp.eq.s32.totalorder %s24, 1
      %p110 = por %p108, %p109
      %p112 = scmp.ne.s32.totalorder %s97, %s111
      %p113 = scmp.eq.s32.totalorder %s24, 0
      %p114 = por %p112, %p113
      %s116 = sadd.s32 %s115, 1
      %p119 = scmp.eq.s32.totalorder %s18, 1
      %p120 = scmp.ne.s32.totalorder %s115, %s117
      %p121 = scmp.eq.s32.totalorder %s18, 0
      %p122 = por %p120, %p121
      %p123 = scmp.ne.s32.totalorder %s115, %s117
      %p124 = scmp.eq.s32.totalorder %s23, 1
      %p125 = por %p123, %p124
      %p126 = scmp.ne.s32.totalorder %s117, %s118
      %p127 = scmp.eq.s32.totalorder %s23, 0
      %p128 = por %p126, %p127
      %p129 = scmp.ne.s32.totalorder %s117, %s118
      %p130 = scmp.eq.s32.totalorder %s24, 1
      %p131 = por %p129, %p130
      %p133 = scmp.ne.s32.totalorder %s118, %s132
      %p134 = scmp.eq.s32.totalorder %s24, 0
      %p135 = por %p133, %p134
      %s137 = sadd.s32 %s136, 1
      %p140 = scmp.eq.s32.totalorder %s18, 1
      %p141 = scmp.ne.s32.totalorder %s136, %s138
      %p142 = scmp.eq.s32.totalorder %s18, 0
      %p143 = por %p141, %p142
      %p144 = scmp.ne.s32.totalorder %s136, %s138
      %p145 = scmp.eq.s32.totalorder %s23, 1
      %p146 = por %p144, %p145
      %p147 = scmp.ne.s32.totalorder %s138, %s139
      %p148 = scmp.eq.s32.totalorder %s23, 0
      %p149 = por %p147, %p148
      %p150 = scmp.ne.s32.totalorder %s138, %s139
      %p151 = scmp.eq.s32.totalorder %s24, 1
      %p152 = por %p150, %p151
      %p154 = scmp.ne.s32.totalorder %s139, %s153
      %p155 = scmp.eq.s32.totalorder %s24, 0
      %p156 = por %p154, %p155
      %s158 = sadd.s32 %s157, 1
      %p161 = scmp.eq.s32.totalorder %s18, 1
      %p162 = scmp.ne.s32.totalorder %s157, %s159
      %p163 = scmp.eq.s32.totalorder %s18, 0
      %p164 = por %p162, %p163
      %p165 = scmp.ne.s32.totalorder %s157, %s159
      %p166 = scmp.eq.s32.totalorder %s23, 1
      %p167 = por %p165, %p166
      %p168 = scmp.ne.s32.totalorder %s159, %s160
      %p169 = scmp.eq.s32.totalorder %s23, 0
      %p170 = por %p168, %p169
      %p171 = scmp.ne.s32.totalorder %s159, %s160
      %p172 = scmp.eq.s32.totalorder %s24, 1
      %p173 = por %p171, %p172
      %p175 = scmp.ne.s32.totalorder %s160, %s174
      %p176 = scmp.eq.s32.totalorder %s24, 0
      %p177 = por %p175, %p176
      %s178 = ssub.s32 %s18, %s25
      %p179 = scmp.eq.s32.totalorder %s178, 0
      %s181 = sadd.s32 %s180, 1
      %s182 = scalar_select %p179, %s180, %s181
      %p185 = pneg %p179
      %p186 = scmp.eq.s32.totalorder %s18, 1
      %p187 = por %p185, %p186
      %p188 = scmp.ne.s32.totalorder %s180, %s183
      %p189 = scmp.eq.s32.totalorder %s18, 0
      %p190 = por %p188, %p189
      %p191 = scmp.ne.s32.totalorder %s180, %s183
      %p192 = scmp.eq.s32.totalorder %s23, 1
      %p193 = por %p191, %p192
      %p194 = scmp.ne.s32.totalorder %s183, %s184
      %p195 = scmp.eq.s32.totalorder %s23, 0
      %p196 = por %p194, %p195
      %p197 = scmp.ne.s32.totalorder %s183, %s184
      %p198 = scmp.eq.s32.totalorder %s24, 1
      %p199 = por %p197, %p198
      %p201 = scmp.ne.s32.totalorder %s184, %s200
      %p202 = scmp.eq.s32.totalorder %s24, 0
      %p203 = por %p201, %p202
      %p204 = scmp.le.s32.totalorder 1, %s18
      %p205 = scmp.lt.s32.totalorder %s18, 3
      %p206 = pnand %p204, %p205
      %p207 = pneg %p206
      // Predicated region
      $region9: #{tpu_custom_call.1} parent=5 // pred_check
        _
      $region10: #{tpu_custom_call.1} parent=5 // pred_check_branch
        %209 = sbr.rel (%p206) target = $region12
      $region11: #{tpu_custom_call.1} parent=5 // pred_region
        %s210 = ssub.s32 %s18, 1
        // Predicated region
        $region13: #{tpu_custom_call.1} parent=11 // pred_check
          %p211 = pneg %p65
        $region14: #{tpu_custom_call.1} parent=11 // pred_check_branch
          %213 = sbr.rel (%p211) target = $region16
        $region15: #{tpu_custom_call.1} parent=11 // pred_region
          %s215 = ssub.s32 4096, 4096
          %216 = vsyncadd [#allocation3], %s215
          %s217 = sshll.u32 [#allocation2], 4
          %s218 = int_to_ptr.vmem [resolvable:$true] %s217
          %223 = dma.hbm_to_vmem [thread:$0]  %s1, 4096, %s218, [#allocation3], 64, 64, 4
        $region16: #{tpu_custom_call.1} parent=11 // pred_fallthru
          _
        // Predicated region
        $region17: #{tpu_custom_call.1} parent=11 // pred_check
          %p224 = pneg %p86
        $region18: #{tpu_custom_call.1} parent=11 // pred_check_branch
          %226 = sbr.rel (%p224) target = $region20
        $region19: #{tpu_custom_call.1} parent=11 // pred_region
          _
        $region20: #{tpu_custom_call.1} parent=11 // pred_fallthru
          _
        // Predicated region
        $region21: #{tpu_custom_call.1} parent=11 // pred_check
          %p227 = pneg %p107
        $region22: #{tpu_custom_call.1} parent=11 // pred_check_branch
          %229 = sbr.rel (%p227) target = $region24
        $region23: #{tpu_custom_call.1} parent=11 // pred_region
          %s231 = ssub.s32 9216, 9216
          %232 = vsyncadd [#allocation6], %s231
          %s233 = sshll.u32 [#allocation5], 4
          %s234 = int_to_ptr.vmem [resolvable:$true] %s233
          %239 = dma.hbm_to_vmem [thread:$0]  %s3, 9216, %s234, [#allocation6], 64, 64, 4
        $region24: #{tpu_custom_call.1} parent=11 // pred_fallthru
          _
        // Predicated region
        $region25: #{tpu_custom_call.1} parent=11 // pred_check
          %p240 = pneg %p128
        $region26: #{tpu_custom_call.1} parent=11 // pred_check_branch
          %242 = sbr.rel (%p240) target = $region28
        $region27: #{tpu_custom_call.1} parent=11 // pred_region
          _
        $region28: #{tpu_custom_call.1} parent=11 // pred_fallthru
          _
        // Predicated region
        $region29: #{tpu_custom_call.1} parent=11 // pred_check
          %p243 = pneg %p149
        $region30: #{tpu_custom_call.1} parent=11 // pred_check_branch
          %245 = sbr.rel (%p243) target = $region32
        $region31: #{tpu_custom_call.1} parent=11 // pred_region
          _
        $region32: #{tpu_custom_call.1} parent=11 // pred_fallthru
          _
        // Predicated region
        $region33: #{tpu_custom_call.1} parent=11 // pred_check
          %p246 = pneg %p170
        $region34: #{tpu_custom_call.1} parent=11 // pred_check_branch
          %248 = sbr.rel (%p246) target = $region36
        $region35: #{tpu_custom_call.1} parent=11 // pred_region
          _
        $region36: #{tpu_custom_call.1} parent=11 // pred_fallthru
          _
      $region12: #{tpu_custom_call.1} parent=5 // pred_fallthru
        _
      %p249 = scmp.lt.s32.totalorder %s18, 2
      // Predicated region
      $region37: #{tpu_custom_call.1} parent=5 // pred_check
        %p250 = pneg %p249
      $region38: #{tpu_custom_call.1} parent=5 // pred_check_branch
        %252 = sbr.rel (%p250) target = $region40
      $region39: #{tpu_custom_call.1} parent=5 // pred_region
        // Predicated region
        $region41: #{tpu_custom_call.1} parent=39 // pred_check
          %p253 = pneg %p38
        $region42: #{tpu_custom_call.1} parent=39 // pred_check_branch
          %255 = sbr.rel (%p253) target = $region44
        $region43: #{tpu_custom_call.1} parent=39 // pred_region
          %p256 = scmp.lt.s32.totalorder %s18, 1
          %s257 = scalar_select %p256, %s18, 1
          %s258 = smul.addr %s257, 18
          %s259 = smul.addr %s258, 4
          %s260 = scalar_lea.vmem %s0, %s259
        $region44: #{tpu_custom_call.1} parent=39 // pred_fallthru
          _
      $region40: #{tpu_custom_call.1} parent=5 // pred_fallthru
        _
      %p261 = scmp.le.s32.totalorder 1, %s18
      %p262 = scmp.lt.s32.totalorder %s18, 3
      %p263 = pnand %p261, %p262
      %p264 = pneg %p263
      // Predicated region
      $region45: #{tpu_custom_call.1} parent=5 // pred_check
        _
      $region46: #{tpu_custom_call.1} parent=5 // pred_check_branch
        %266 = sbr.rel (%p263) target = $region48
      $region47: #{tpu_custom_call.1} parent=5 // pred_region
        %s267 = ssub.s32 %s18, 1
        // Predicated region
        $region49: #{tpu_custom_call.1} parent=47 // pred_check
          %p268 = pneg %p65
        $region50: #{tpu_custom_call.1} parent=47 // pred_check_branch
          %270 = sbr.rel (%p268) target = $region52
        $region51: #{tpu_custom_call.1} parent=47 // pred_region
          %271 = dma.done [#allocation3], 4096
        $region52: #{tpu_custom_call.1} parent=47 // pred_fallthru
          _
        // Predicated region
        $region53: #{tpu_custom_call.1} parent=47 // pred_check
          %p272 = pneg %p107
        $region54: #{tpu_custom_call.1} parent=47 // pred_check_branch
          %274 = sbr.rel (%p272) target = $region56
        $region55: #{tpu_custom_call.1} parent=47 // pred_region
          %275 = dma.done [#allocation6], 9216
        $region56: #{tpu_custom_call.1} parent=47 // pred_fallthru
          _
        %p276 = scmp.lt.s32.totalorder %s23, 1
        %s277 = scalar_select %p276, %s23, 1
        %s278 = smul.addr %s277, 18
        %s279 = smul.addr %s278, 4
        %s280 = scalar_lea.vmem %s0, %s279
        %p281 = pneg %p44
        %p282 = pneg %p41
        %p283 = pneg %p65
        %p284 = pneg %p62
        %p285 = pneg %p86
        %p286 = pneg %p83
        %p287 = pneg %p107
        %p288 = pneg %p104
        %p289 = pneg %p128
        %p290 = pneg %p125
        %p291 = pneg %p149
        %p292 = pneg %p146
        %p293 = pneg %p170
        %p294 = pneg %p167
        %p295 = pneg %p196
        %p296 = pneg %p193
        %s297 = sand.u32 %s183, 1
        %s298 = scalar_lea.sflag [#allocation4], %s297
        %s299 = sand.u32 %s183, 1
        %s300 = scalar_lea.vmem [#allocation7], %s299
        %p301 = scmp.lt.s32.totalorder %s23, 1
        %s302 = scalar_select %p301, %s23, 1
        %s303 = smul.addr %s302, 18
        %s304 = smul.addr %s303, 4
        %s305 = scalar_lea.vmem %s0, %s304
        %v307 = vld [vmem:[%s305] sm:$0xf]
        %v308 = vld [vmem:[%s305 + $0x4] sm:$0x1]
        %v309 = vld [vmem:[%s305 + $0x8] sm:$0xf]
        %v310 = vld [vmem:[%s305 + $0xc] sm:$0x1]
        %v311 = vld [vmem:[%s305 + $0x10] sm:$0xf]
        %v312 = vld [vmem:[%s305 + $0x14] sm:$0x1]
        %v313 = vld [vmem:[%s305 + $0x18] sm:$0xf]
        %v314 = vld [vmem:[%s305 + $0x1c] sm:$0x1]
        %v315 = vld [vmem:[%s305 + $0x20] sm:$0xf]
        %v316 = vld [vmem:[%s305 + $0x24] sm:$0x1]
        %v317 = vld [vmem:[%s305 + $0x28] sm:$0xf]
        %v318 = vld [vmem:[%s305 + $0x2c] sm:$0x1]
        %v319 = vld [vmem:[%s305 + $0x30] sm:$0xf]
        %v320 = vld [vmem:[%s305 + $0x34] sm:$0x1]
        %v321 = vld [vmem:[%s305 + $0x38] sm:$0xf]
        %v322 = vld [vmem:[%s305 + $0x3c] sm:$0x1]
        %v323 = vld [vmem:[%s305 + $0x40] sm:$0xf]
        %v324 = vld [vmem:[%s305 + $0x44] sm:$0x1]
        %v325 = vunpack.c.l.bf16 %v307
        %v326 = vunpack.c.l.bf16 %v308
        %v327 = vunpack.c.l.bf16 %v309
        %v328 = vunpack.c.l.bf16 %v310
        %v329 = vunpack.c.l.bf16 %v311
        %v330 = vunpack.c.l.bf16 %v312
        %v331 = vunpack.c.l.bf16 %v313
        %v332 = vunpack.c.l.bf16 %v314
        %v333 = vunpack.c.l.bf16 %v315
        %v334 = vunpack.c.l.bf16 %v316
        %v335 = vunpack.c.l.bf16 %v317
        %v336 = vunpack.c.l.bf16 %v318
        %v337 = vunpack.c.l.bf16 %v319
        %v338 = vunpack.c.l.bf16 %v320
        %v339 = vunpack.c.l.bf16 %v321
        %v340 = vunpack.c.l.bf16 %v322
        %v341 = vunpack.c.l.bf16 %v323
        %v342 = vunpack.c.l.bf16 %v324
        %v343 = vpack.c.bf16 %v327, %v325
        %v344 = vpack.c.bf16 %v331, %v329
        %v345 = vpack.c.bf16 %v335, %v333
        %v346 = vpack.c.bf16 %v339, %v337
        %v347 = vld [vmem:[#allocation2] sm:$0xf]
        %v348 = vld [vmem:[#allocation2 + $0x4] sm:$0xf]
        %v349 = vld [vmem:[#allocation2 + $0x8] sm:$0xf]
        %v350 = vld [vmem:[#allocation2 + $0xc] sm:$0xf]
        %v351 = vld [vmem:[#allocation2 + $0x10] sm:$0xf]
        %v352 = vld [vmem:[#allocation2 + $0x14] sm:$0xf]
        %v353 = vld [vmem:[#allocation2 + $0x18] sm:$0xf]
        %v354 = vld [vmem:[#allocation2 + $0x1c] sm:$0xf]
        %v355 = vld [vmem:[#allocation2 + $0x20] sm:$0xf]
        %v356 = vld [vmem:[#allocation2 + $0x24] sm:$0xf]
        %v357 = vld [vmem:[#allocation2 + $0x28] sm:$0xf]
        %v358 = vld [vmem:[#allocation2 + $0x2c] sm:$0xf]
        %v359 = vld [vmem:[#allocation2 + $0x30] sm:$0xf]
        %v360 = vld [vmem:[#allocation2 + $0x34] sm:$0xf]
        %v361 = vld [vmem:[#allocation2 + $0x38] sm:$0xf]
        %v362 = vld [vmem:[#allocation2 + $0x3c] sm:$0xf]
        %vm379 = vcmask 1046528
        %v380 = vrot.slane %v325, 1
        %v381 = vrot.slane %v326, 1
        %v382 = vsel %vm379, %v380, %v381
        %v383 = vrot.slane %v327, 1
        %v384 = vrot.slane %v328, 1
        %v385 = vsel %vm379, %v383, %v384
        %v386 = vrot.slane %v329, 1
        %v387 = vrot.slane %v330, 1
        %v388 = vsel %vm379, %v386, %v387
        %v389 = vrot.slane %v331, 1
        %v390 = vrot.slane %v332, 1
        %v391 = vsel %vm379, %v389, %v390
        %v392 = vrot.slane %v333, 1
        %v393 = vrot.slane %v334, 1
        %v394 = vsel %vm379, %v392, %v393
        %v395 = vrot.slane %v335, 1
        %v396 = vrot.slane %v336, 1
        %v397 = vsel %vm379, %v395, %v396
        %v398 = vrot.slane %v337, 1
        %v399 = vrot.slane %v338, 1
        %v400 = vsel %vm379, %v398, %v399
        %v401 = vrot.slane %v339, 1
        %v402 = vrot.slane %v340, 1
        %v403 = vsel %vm379, %v401, %v402
        %v412 = vpack.c.bf16 %v385, %v382
        %v413 = vpack.c.bf16 %v391, %v388
        %v414 = vpack.c.bf16 %v397, %v394
        %v415 = vpack.c.bf16 %v403, %v400
        %s416 = scalar_lea.vmem [#allocation2], 64
        %v417 = vld [vmem:[%s416] sm:$0xf]
        %v418 = vld [vmem:[%s416 + $0x4] sm:$0xf]
        %v419 = vld [vmem:[%s416 + $0x8] sm:$0xf]
        %v420 = vld [vmem:[%s416 + $0xc] sm:$0xf]
        %v421 = vld [vmem:[%s416 + $0x10] sm:$0xf]
        %v422 = vld [vmem:[%s416 + $0x14] sm:$0xf]
        %v423 = vld [vmem:[%s416 + $0x18] sm:$0xf]
        %v424 = vld [vmem:[%s416 + $0x1c] sm:$0xf]
        %v425 = vld [vmem:[%s416 + $0x20] sm:$0xf]
        %v426 = vld [vmem:[%s416 + $0x24] sm:$0xf]
        %v427 = vld [vmem:[%s416 + $0x28] sm:$0xf]
        %v428 = vld [vmem:[%s416 + $0x2c] sm:$0xf]
        %v429 = vld [vmem:[%s416 + $0x30] sm:$0xf]
        %v430 = vld [vmem:[%s416 + $0x34] sm:$0xf]
        %v431 = vld [vmem:[%s416 + $0x38] sm:$0xf]
        %v432 = vld [vmem:[%s416 + $0x3c] sm:$0xf]
        %v449 = vunpack.c.l.b16 %v417
        %v450 = vunpack.c.l.b16 %v418
        %v451 = vunpack.c.l.b16 %v419
        %v452 = vunpack.c.l.b16 %v420
        %v453 = vunpack.c.l.b16 %v421
        %v454 = vunpack.c.l.b16 %v422
        %v455 = vunpack.c.l.b16 %v423
        %v456 = vunpack.c.l.b16 %v424
        %v457 = vunpack.c.l.b16 %v425
        %v458 = vunpack.c.l.b16 %v426
        %v459 = vunpack.c.l.b16 %v427
        %v460 = vunpack.c.l.b16 %v428
        %v461 = vunpack.c.l.b16 %v429
        %v462 = vunpack.c.l.b16 %v430
        %v463 = vunpack.c.l.b16 %v431
        %v464 = vunpack.c.l.b16 %v432
        %v465 = vpack.c.b16 %v450, %v449
        %v466 = vpack.c.b16 %v452, %v451
        %v467 = vpack.c.b16 %v454, %v453
        %v468 = vpack.c.b16 %v456, %v455
        %v469 = vpack.c.b16 %v458, %v457
        %v470 = vpack.c.b16 %v460, %v459
        %v471 = vpack.c.b16 %v462, %v461
        %v472 = vpack.c.b16 %v464, %v463
        %481 = vmatprep.subr.bf16.mxu0 0
        %482 = vmatpush1.bf16.msra.mxu0 %v465
        %483 = vmatprep.subr.bf16.mxu0 0
        %484 = vmatpush1.bf16.msra.mxu0 %v466
        %485 = vmatprep.subr.bf16.mxu0 0
        %486 = vmatpush1.bf16.msra.mxu0 %v467
        %487 = vmatprep.subr.bf16.mxu0 0
        %488 = vmatpush1.bf16.msra.mxu0 %v468
        %489 = vmatprep.subr.bf16.mxu0 0
        %490 = vmatpush1.bf16.msra.mxu0 %v469
        %491 = vmatprep.subr.bf16.mxu0 0
        %492 = vmatpush1.bf16.msra.mxu0 %v470
        %493 = vmatprep.subr.bf16.mxu0 0
        %494 = vmatpush1.bf16.msra.mxu0 %v471
        %495 = vmatprep.subr.bf16.mxu0 0
        %496 = vmatpush1.bf16.msra.mxu0 %v472
        %497 = vmatprep.subr.bf16.mxu0 0
        %498 = vmatpush1.bf16.msra.mxu0 0
        %499 = vmatprep.subr.bf16.mxu0 0
        %500 = vmatpush1.bf16.msra.mxu0 0
        %501 = vmatprep.subr.bf16.mxu0 0
        %502 = vmatpush1.bf16.msra.mxu0 0
        %503 = vmatprep.subr.bf16.mxu0 0
        %504 = vmatpush1.bf16.msra.mxu0 0
        %505 = vmatprep.subr.bf16.mxu0 0
        %506 = vmatpush1.bf16.msra.mxu0 0
        %507 = vmatprep.subr.bf16.mxu0 0
        %508 = vmatpush1.bf16.msra.mxu0 0
        %509 = vmatprep.subr.bf16.mxu0 0
        %510 = vmatpush1.bf16.msra.mxu0 0
        %511 = vmatprep.subr.bf16.mxu0 0
        %512 = vmatpush1.bf16.msra.mxu0 0
        %513 = vmatprep.mubr.bf16.mxu0 0
        %514 = vmatmul.mubr.bf16.gmra.mrb[0].mxu0 %v412
        %v515 = vpop.f32.mrb[0].mxu0
        %v516 = vadd.f32 0.0, %v515
        %v517 = vpop.f32.mrb[0].mxu0
        %v518 = vpop.f32.mrb[0].mxu0
        %v519 = vadd.f32 0.0, %v518
        %v520 = vpop.f32.mrb[0].mxu0
        %521 = vmatprep.mubr.bf16.mxu0 0
        %522 = vmatmul.mubr.bf16.gmra.mrb[0].mxu0 %v413
        %v523 = vpop.f32.mrb[0].mxu0
        %v524 = vadd.f32 0.0, %v523
        %v525 = vpop.f32.mrb[0].mxu0
        %v526 = vpop.f32.mrb[0].mxu0
        %v527 = vadd.f32 0.0, %v526
        %v528 = vpop.f32.mrb[0].mxu0
        %529 = vmatprep.mubr.bf16.mxu0 0
        %530 = vmatmul.mubr.bf16.gmra.mrb[0].mxu0 %v414
        %v531 = vpop.f32.mrb[0].mxu0
        %v532 = vadd.f32 0.0, %v531
        %v533 = vpop.f32.mrb[0].mxu0
        %v534 = vpop.f32.mrb[0].mxu0
        %v535 = vadd.f32 0.0, %v534
        %v536 = vpop.f32.mrb[0].mxu0
        %537 = vmatprep.mubr.bf16.mxu0 0
        %538 = vmatmul.mubr.bf16.gmra.mrb[0].mxu0 %v415
        %v539 = vpop.f32.mrb[0].mxu0
        %v540 = vadd.f32 0.0, %v539
        %v541 = vpop.f32.mrb[0].mxu0
        %v542 = vpop.f32.mrb[0].mxu0
        %v543 = vadd.f32 0.0, %v542
        %v544 = vpop.f32.mrb[0].mxu0
        %545 = vdwg.mxu0
        %v562 = vunpack.c.l.b16 %v347
        %v563 = vunpack.c.l.b16 %v348
        %v564 = vunpack.c.l.b16 %v349
        %v565 = vunpack.c.l.b16 %v350
        %v566 = vunpack.c.l.b16 %v351
        %v567 = vunpack.c.l.b16 %v352
        %v568 = vunpack.c.l.b16 %v353
        %v569 = vunpack.c.l.b16 %v354
        %v570 = vunpack.c.l.b16 %v355
        %v571 = vunpack.c.l.b16 %v356
        %v572 = vunpack.c.l.b16 %v357
        %v573 = vunpack.c.l.b16 %v358
        %v574 = vunpack.c.l.b16 %v359
        %v575 = vunpack.c.l.b16 %v360
        %v576 = vunpack.c.l.b16 %v361
        %v577 = vunpack.c.l.b16 %v362
        %v578 = vpack.c.b16 %v563, %v562
        %v579 = vpack.c.b16 %v565, %v564
        %v580 = vpack.c.b16 %v567, %v566
        %v581 = vpack.c.b16 %v569, %v568
        %v582 = vpack.c.b16 %v571, %v570
        %v583 = vpack.c.b16 %v573, %v572
        %v584 = vpack.c.b16 %v575, %v574
        %v585 = vpack.c.b16 %v577, %v576
        %594 = vmatprep.subr.bf16.mxu0 0
        %595 = vmatpush1.bf16.msra.mxu0 %v578
        %596 = vmatprep.subr.bf16.mxu0 0
        %597 = vmatpush1.bf16.msra.mxu0 %v579
        %598 = vmatprep.subr.bf16.mxu0 0
        %599 = vmatpush1.bf16.msra.mxu0 %v580
        %600 = vmatprep.subr.bf16.mxu0 0
        %601 = vmatpush1.bf16.msra.mxu0 %v581
        %602 = vmatprep.subr.bf16.mxu0 0
        %603 = vmatpush1.bf16.msra.mxu0 %v582
        %604 = vmatprep.subr.bf16.mxu0 0
        %605 = vmatpush1.bf16.msra.mxu0 %v583
        %606 = vmatprep.subr.bf16.mxu0 0
        %607 = vmatpush1.bf16.msra.mxu0 %v584
        %608 = vmatprep.subr.bf16.mxu0 0
        %609 = vmatpush1.bf16.msra.mxu0 %v585
        %610 = vmatprep.subr.bf16.mxu0 0
        %611 = vmatpush1.bf16.msra.mxu0 0
        %612 = vmatprep.subr.bf16.mxu0 0
        %613 = vmatpush1.bf16.msra.mxu0 0
        %614 = vmatprep.subr.bf16.mxu0 0
        %615 = vmatpush1.bf16.msra.mxu0 0
        %616 = vmatprep.subr.bf16.mxu0 0
        %617 = vmatpush1.bf16.msra.mxu0 0
        %618 = vmatprep.subr.bf16.mxu0 0
        %619 = vmatpush1.bf16.msra.mxu0 0
        %620 = vmatprep.subr.bf16.mxu0 0
        %621 = vmatpush1.bf16.msra.mxu0 0
        %622 = vmatprep.subr.bf16.mxu0 0
        %623 = vmatpush1.bf16.msra.mxu0 0
        %624 = vmatprep.subr.bf16.mxu0 0
        %625 = vmatpush1.bf16.msra.mxu0 0
        %626 = vmatprep.mubr.bf16.mxu0 0
        %627 = vmatmul.mubr.bf16.gmra.mrb[0].mxu0 %v343
        %v628 = vpop.f32.mrb[0].mxu0
        %v629 = vadd.f32 %v516, %v628
        %v630 = vpop.f32.mrb[0].mxu0
        %v631 = vpop.f32.mrb[0].mxu0
        %v632 = vadd.f32 %v519, %v631
        %v633 = vpop.f32.mrb[0].mxu0
        %634 = vmatprep.mubr.bf16.mxu0 0
        %635 = vmatmul.mubr.bf16.gmra.mrb[0].mxu0 %v344
        %v636 = vpop.f32.mrb[0].mxu0
        %v637 = vadd.f32 %v524, %v636
        %v638 = vpop.f32.mrb[0].mxu0
        %v639 = vpop.f32.mrb[0].mxu0
        %v640 = vadd.f32 %v527, %v639
        %v641 = vpop.f32.mrb[0].mxu0
        %642 = vmatprep.mubr.bf16.mxu0 0
        %643 = vmatmul.mubr.bf16.gmra.mrb[0].mxu0 %v345
        %v644 = vpop.f32.mrb[0].mxu0
        %v645 = vadd.f32 %v532, %v644
        %v646 = vpop.f32.mrb[0].mxu0
        %v647 = vpop.f32.mrb[0].mxu0
        %v648 = vadd.f32 %v535, %v647
        %v649 = vpop.f32.mrb[0].mxu0
        %650 = vmatprep.mubr.bf16.mxu0 0
        %651 = vmatmul.mubr.bf16.gmra.mrb[0].mxu0 %v346
        %v652 = vpop.f32.mrb[0].mxu0
        %v653 = vadd.f32 %v540, %v652
        %v654 = vpop.f32.mrb[0].mxu0
        %v655 = vpop.f32.mrb[0].mxu0
        %v656 = vadd.f32 %v543, %v655
        %v657 = vpop.f32.mrb[0].mxu0
        %658 = vdwg.mxu0
        %v659 = vpack.c.bf16 %v329, %v327
        %v660 = vpack.c.bf16 %v333, %v331
        %v661 = vpack.c.bf16 %v337, %v335
        %v662 = vpack.c.bf16 %v341, %v339
        %s663 = scalar_lea.vmem [#allocation2], 128
        %v664 = vld [vmem:[%s663] sm:$0xf]
        %v665 = vld [vmem:[%s663 + $0x4] sm:$0xf]
        %v666 = vld [vmem:[%s663 + $0x8] sm:$0xf]
        %v667 = vld [vmem:[%s663 + $0xc] sm:$0xf]
        %v668 = vld [vmem:[%s663 + $0x10] sm:$0xf]
        %v669 = vld [vmem:[%s663 + $0x14] sm:$0xf]
        %v670 = vld [vmem:[%s663 + $0x18] sm:$0xf]
        %v671 = vld [vmem:[%s663 + $0x1c] sm:$0xf]
        %v672 = vld [vmem:[%s663 + $0x20] sm:$0xf]
        %v673 = vld [vmem:[%s663 + $0x24] sm:$0xf]
        %v674 = vld [vmem:[%s663 + $0x28] sm:$0xf]
        %v675 = vld [vmem:[%s663 + $0x2c] sm:$0xf]
        %v676 = vld [vmem:[%s663 + $0x30] sm:$0xf]
        %v677 = vld [vmem:[%s663 + $0x34] sm:$0xf]
        %v678 = vld [vmem:[%s663 + $0x38] sm:$0xf]
        %v679 = vld [vmem:[%s663 + $0x3c] sm:$0xf]
        %v696 = vunpack.c.l.b16 %v664
        %v697 = vunpack.c.l.b16 %v665
        %v698 = vunpack.c.l.b16 %v666
        %v699 = vunpack.c.l.b16 %v667
        %v700 = vunpack.c.l.b16 %v668
        %v701 = vunpack.c.l.b16 %v669
        %v702 = vunpack.c.l.b16 %v670
        %v703 = vunpack.c.l.b16 %v671
        %v704 = vunpack.c.l.b16 %v672
        %v705 = vunpack.c.l.b16 %v673
        %v706 = vunpack.c.l.b16 %v674
        %v707 = vunpack.c.l.b16 %v675
        %v708 = vunpack.c.l.b16 %v676
        %v709 = vunpack.c.l.b16 %v677
        %v710 = vunpack.c.l.b16 %v678
        %v711 = vunpack.c.l.b16 %v679
        %v712 = vpack.c.b16 %v697, %v696
        %v713 = vpack.c.b16 %v699, %v698
        %v714 = vpack.c.b16 %v701, %v700
        %v715 = vpack.c.b16 %v703, %v702
        %v716 = vpack.c.b16 %v705, %v704
        %v717 = vpack.c.b16 %v707, %v706
        %v718 = vpack.c.b16 %v709, %v708
        %v719 = vpack.c.b16 %v711, %v710
        %728 = vmatprep.subr.bf16.mxu0 0
        %729 = vmatpush1.bf16.msra.mxu0 %v712
        %730 = vmatprep.subr.bf16.mxu0 0
        %731 = vmatpush1.bf16.msra.mxu0 %v713
        %732 = vmatprep.subr.bf16.mxu0 0
        %733 = vmatpush1.bf16.msra.mxu0 %v714
        %734 = vmatprep.subr.bf16.mxu0 0
        %735 = vmatpush1.bf16.msra.mxu0 %v715
        %736 = vmatprep.subr.bf16.mxu0 0
        %737 = vmatpush1.bf16.msra.mxu0 %v716
        %738 = vmatprep.subr.bf16.mxu0 0
        %739 = vmatpush1.bf16.msra.mxu0 %v717
        %740 = vmatprep.subr.bf16.mxu0 0
        %741 = vmatpush1.bf16.msra.mxu0 %v718
        %742 = vmatprep.subr.bf16.mxu0 0
        %743 = vmatpush1.bf16.msra.mxu0 %v719
        %744 = vmatprep.subr.bf16.mxu0 0
        %745 = vmatpush1.bf16.msra.mxu0 0
        %746 = vmatprep.subr.bf16.mxu0 0
        %747 = vmatpush1.bf16.msra.mxu0 0
        %748 = vmatprep.subr.bf16.mxu0 0
        %749 = vmatpush1.bf16.msra.mxu0 0
        %750 = vmatprep.subr.bf16.mxu0 0
        %751 = vmatpush1.bf16.msra.mxu0 0
        %752 = vmatprep.subr.bf16.mxu0 0
        %753 = vmatpush1.bf16.msra.mxu0 0
        %754 = vmatprep.subr.bf16.mxu0 0
        %755 = vmatpush1.bf16.msra.mxu0 0
        %756 = vmatprep.subr.bf16.mxu0 0
        %757 = vmatpush1.bf16.msra.mxu0 0
        %758 = vmatprep.subr.bf16.mxu0 0
        %759 = vmatpush1.bf16.msra.mxu0 0
        %760 = vmatprep.mubr.bf16.mxu0 0
        %761 = vmatmul.mubr.bf16.gmra.mrb[0].mxu0 %v659
        %v762 = vpop.f32.mrb[0].mxu0
        %v763 = vadd.f32 0.0, %v762
        %v764 = vpop.f32.mrb[0].mxu0
        %v765 = vpop.f32.mrb[0].mxu0
        %v766 = vadd.f32 0.0, %v765
        %v767 = vpop.f32.mrb[0].mxu0
        %768 = vmatprep.mubr.bf16.mxu0 0
        %769 = vmatmul.mubr.bf16.gmra.mrb[0].mxu0 %v660
        %v770 = vpop.f32.mrb[0].mxu0
        %v771 = vadd.f32 0.0, %v770
        %v772 = vpop.f32.mrb[0].mxu0
        %v773 = vpop.f32.mrb[0].mxu0
        %v774 = vadd.f32 0.0, %v773
        %v775 = vpop.f32.mrb[0].mxu0
        %776 = vmatprep.mubr.bf16.mxu0 0
        %777 = vmatmul.mubr.bf16.gmra.mrb[0].mxu0 %v661
        %v778 = vpop.f32.mrb[0].mxu0
        %v779 = vadd.f32 0.0, %v778
        %v780 = vpop.f32.mrb[0].mxu0
        %v781 = vpop.f32.mrb[0].mxu0
        %v782 = vadd.f32 0.0, %v781
        %v783 = vpop.f32.mrb[0].mxu0
        %784 = vmatprep.mubr.bf16.mxu0 0
        %785 = vmatmul.mubr.bf16.gmra.mrb[0].mxu0 %v662
        %v786 = vpop.f32.mrb[0].mxu0
        %v787 = vadd.f32 0.0, %v786
        %v788 = vpop.f32.mrb[0].mxu0
        %v789 = vpop.f32.mrb[0].mxu0
        %v790 = vadd.f32 0.0, %v789
        %v791 = vpop.f32.mrb[0].mxu0
        %792 = vdwg.mxu0
        %v793 = vadd.f32 %v629, %v763
        %v794 = vadd.f32 %v632, %v766
        %v795 = vadd.f32 %v637, %v771
        %v796 = vadd.f32 %v640, %v774
        %v797 = vadd.f32 %v645, %v779
        %v798 = vadd.f32 %v648, %v782
        %v799 = vadd.f32 %v653, %v787
        %v800 = vadd.f32 %v656, %v790
        %v803 = vrot.slane %v341, 1
        %v804 = vrot.slane %v342, 1
        %v805 = vsel %vm379, %v803, %v804
        %v807 = vpack.c.bf16 %v388, %v385
        %v808 = vpack.c.bf16 %v394, %v391
        %v809 = vpack.c.bf16 %v400, %v397
        %v810 = vpack.c.bf16 %v805, %v403
        %s811 = scalar_lea.vmem [#allocation2], 192
        %v812 = vld [vmem:[%s811] sm:$0xf]
        %v813 = vld [vmem:[%s811 + $0x4] sm:$0xf]
        %v814 = vld [vmem:[%s811 + $0x8] sm:$0xf]
        %v815 = vld [vmem:[%s811 + $0xc] sm:$0xf]
        %v816 = vld [vmem:[%s811 + $0x10] sm:$0xf]
        %v817 = vld [vmem:[%s811 + $0x14] sm:$0xf]
        %v818 = vld [vmem:[%s811 + $0x18] sm:$0xf]
        %v819 = vld [vmem:[%s811 + $0x1c] sm:$0xf]
        %v820 = vld [vmem:[%s811 + $0x20] sm:$0xf]
        %v821 = vld [vmem:[%s811 + $0x24] sm:$0xf]
        %v822 = vld [vmem:[%s811 + $0x28] sm:$0xf]
        %v823 = vld [vmem:[%s811 + $0x2c] sm:$0xf]
        %v824 = vld [vmem:[%s811 + $0x30] sm:$0xf]
        %v825 = vld [vmem:[%s811 + $0x34] sm:$0xf]
        %v826 = vld [vmem:[%s811 + $0x38] sm:$0xf]
        %v827 = vld [vmem:[%s811 + $0x3c] sm:$0xf]
        %v844 = vunpack.c.l.b16 %v812
        %v845 = vunpack.c.l.b16 %v813
        %v846 = vunpack.c.l.b16 %v814
        %v847 = vunpack.c.l.b16 %v815
        %v848 = vunpack.c.l.b16 %v816
        %v849 = vunpack.c.l.b16 %v817
        %v850 = vunpack.c.l.b16 %v818
        %v851 = vunpack.c.l.b16 %v819
        %v852 = vunpack.c.l.b16 %v820
        %v853 = vunpack.c.l.b16 %v821
        %v854 = vunpack.c.l.b16 %v822
        %v855 = vunpack.c.l.b16 %v823
        %v856 = vunpack.c.l.b16 %v824
        %v857 = vunpack.c.l.b16 %v825
        %v858 = vunpack.c.l.b16 %v826
        %v859 = vunpack.c.l.b16 %v827
        %v860 = vpack.c.b16 %v845, %v844
        %v861 = vpack.c.b16 %v847, %v846
        %v862 = vpack.c.b16 %v849, %v848
        %v863 = vpack.c.b16 %v851, %v850
        %v864 = vpack.c.b16 %v853, %v852
        %v865 = vpack.c.b16 %v855, %v854
        %v866 = vpack.c.b16 %v857, %v856
        %v867 = vpack.c.b16 %v859, %v858
        %876 = vmatprep.subr.bf16.mxu0 0
        %877 = vmatpush1.bf16.msra.mxu0 %v860
        %878 = vmatprep.subr.bf16.mxu0 0
        %879 = vmatpush1.bf16.msra.mxu0 %v861
        %880 = vmatprep.subr.bf16.mxu0 0
        %881 = vmatpush1.bf16.msra.mxu0 %v862
        %882 = vmatprep.subr.bf16.mxu0 0
        %883 = vmatpush1.bf16.msra.mxu0 %v863
        %884 = vmatprep.subr.bf16.mxu0 0
        %885 = vmatpush1.bf16.msra.mxu0 %v864
        %886 = vmatprep.subr.bf16.mxu0 0
        %887 = vmatpush1.bf16.msra.mxu0 %v865
        %888 = vmatprep.subr.bf16.mxu0 0
        %889 = vmatpush1.bf16.msra.mxu0 %v866
        %890 = vmatprep.subr.bf16.mxu0 0
        %891 = vmatpush1.bf16.msra.mxu0 %v867
        %892 = vmatprep.subr.bf16.mxu0 0
        %893 = vmatpush1.bf16.msra.mxu0 0
        %894 = vmatprep.subr.bf16.mxu0 0
        %895 = vmatpush1.bf16.msra.mxu0 0
        %896 = vmatprep.subr.bf16.mxu0 0
        %897 = vmatpush1.bf16.msra.mxu0 0
        %898 = vmatprep.subr.bf16.mxu0 0
        %899 = vmatpush1.bf16.msra.mxu0 0
        %900 = vmatprep.subr.bf16.mxu0 0
        %901 = vmatpush1.bf16.msra.mxu0 0
        %902 = vmatprep.subr.bf16.mxu0 0
        %903 = vmatpush1.bf16.msra.mxu0 0
        %904 = vmatprep.subr.bf16.mxu0 0
        %905 = vmatpush1.bf16.msra.mxu0 0
        %906 = vmatprep.subr.bf16.mxu0 0
        %907 = vmatpush1.bf16.msra.mxu0 0
        %908 = vmatprep.mubr.bf16.mxu0 0
        %909 = vmatmul.mubr.bf16.gmra.mrb[0].mxu0 %v807
        %v910 = vpop.f32.mrb[0].mxu0
        %v911 = vadd.f32 0.0, %v910
        %v912 = vpop.f32.mrb[0].mxu0
        %v913 = vpop.f32.mrb[0].mxu0
        %v914 = vadd.f32 0.0, %v913
        %v915 = vpop.f32.mrb[0].mxu0
        %916 = vmatprep.mubr.bf16.mxu0 0
        %917 = vmatmul.mubr.bf16.gmra.mrb[0].mxu0 %v808
        %v918 = vpop.f32.mrb[0].mxu0
        %v919 = vadd.f32 0.0, %v918
        %v920 = vpop.f32.mrb[0].mxu0
        %v921 = vpop.f32.mrb[0].mxu0
        %v922 = vadd.f32 0.0, %v921
        %v923 = vpop.f32.mrb[0].mxu0
        %924 = vmatprep.mubr.bf16.mxu0 0
        %925 = vmatmul.mubr.bf16.gmra.mrb[0].mxu0 %v809
        %v926 = vpop.f32.mrb[0].mxu0
        %v927 = vadd.f32 0.0, %v926
        %v928 = vpop.f32.mrb[0].mxu0
        %v929 = vpop.f32.mrb[0].mxu0
        %v930 = vadd.f32 0.0, %v929
        %v931 = vpop.f32.mrb[0].mxu0
        %932 = vmatprep.mubr.bf16.mxu0 0
        %933 = vmatmul.mubr.bf16.gmra.mrb[0].mxu0 %v810
        %v934 = vpop.f32.mrb[0].mxu0
        %v935 = vadd.f32 0.0, %v934
        %v936 = vpop.f32.mrb[0].mxu0
        %v937 = vpop.f32.mrb[0].mxu0
        %v938 = vadd.f32 0.0, %v937
        %v939 = vpop.f32.mrb[0].mxu0
        %940 = vdwg.mxu0
        %v941 = vadd.f32 %v793, %v911
        %v942 = vadd.f32 %v794, %v914
        %v943 = vadd.f32 %v795, %v919
        %v944 = vadd.f32 %v796, %v922
        %v945 = vadd.f32 %v797, %v927
        %v946 = vadd.f32 %v798, %v930
        %v947 = vadd.f32 %v799, %v935
        %v948 = vadd.f32 %v800, %v938
        %v949 = vld [vmem:[%s2] sm:$0x1]
        %v951 = vlaneseq
        %v952 = vshrl.u32 %v951, 7
        %v953 = vsub.s32 0, %v952
        %v954 = vrot.slane %v949, %v953
        %v956 = vadd.f32 %v941, %v954
        %v957 = vadd.f32 %v942, %v954
        %v958 = vadd.f32 %v943, %v954
        %v959 = vadd.f32 %v944, %v954
        %v960 = vadd.f32 %v945, %v954
        %v961 = vadd.f32 %v946, %v954
        %v962 = vadd.f32 %v947, %v954
        %v963 = vadd.f32 %v948, %v954
        %vm964 = vcmp.ge.f32.partialorder %v956, 0.0
        %vm965 = vcmp.ge.f32.partialorder %v957, 0.0
        %vm966 = vcmp.ge.f32.partialorder %v958, 0.0
        %vm967 = vcmp.ge.f32.partialorder %v959, 0.0
        %vm968 = vcmp.ge.f32.partialorder %v960, 0.0
        %vm969 = vcmp.ge.f32.partialorder %v961, 0.0
        %vm970 = vcmp.ge.f32.partialorder %v962, 0.0
        %vm971 = vcmp.ge.f32.partialorder %v963, 0.0
        %v972 = vmul.f32 %v956, 0.2
        %v973 = vmul.f32 %v957, 0.2
        %v974 = vmul.f32 %v958, 0.2
        %v975 = vmul.f32 %v959, 0.2
        %v976 = vmul.f32 %v960, 0.2
        %v977 = vmul.f32 %v961, 0.2
        %v978 = vmul.f32 %v962, 0.2
        %v979 = vmul.f32 %v963, 0.2
        %v980 = vsel %vm964, %v956, %v972
        %v981 = vsel %vm965, %v957, %v973
        %v982 = vsel %vm966, %v958, %v974
        %v983 = vsel %vm967, %v959, %v975
        %v984 = vsel %vm968, %v960, %v976
        %v985 = vsel %vm969, %v961, %v977
        %v986 = vsel %vm970, %v962, %v978
        %v987 = vsel %vm971, %v963, %v979
        %v997 = vrot.slane 0.0, 7
        %v998 = vrot.slane %v980, 7
        %v999 = vrot.slane %v981, 7
        %v1000 = vrot.slane %v982, 7
        %v1001 = vrot.slane %v983, 7
        %v1002 = vrot.slane %v984, 7
        %v1003 = vrot.slane %v985, 7
        %v1004 = vrot.slane %v986, 7
        %v1005 = vrot.slane %v987, 7
        %vm1015 = vcmask 1040384
        %v1016 = vsel %vm1015, 0.0, %v997
        %v1017 = vsel %vm1015, 0.0, %v998
        %v1018 = vsel %vm1015, 0.0, %v999
        %v1019 = vsel %vm1015, 0.0, %v1000
        %v1020 = vsel %vm1015, 0.0, %v1001
        %v1021 = vsel %vm1015, 0.0, %v1002
        %v1022 = vsel %vm1015, 0.0, %v1003
        %v1023 = vsel %vm1015, 0.0, %v1004
        %v1024 = vsel %vm1015, 0.0, %v1005
        %v1025 = vsel %vm1015, %v997, 0.0
        %v1026 = vsel %vm1015, %v998, 0.0
        %v1027 = vsel %vm1015, %v999, 0.0
        %v1028 = vsel %vm1015, %v1000, 0.0
        %v1029 = vsel %vm1015, %v1001, 0.0
        %v1030 = vsel %vm1015, %v1002, 0.0
        %v1031 = vsel %vm1015, %v1003, 0.0
        %v1032 = vsel %vm1015, %v1004, 0.0
        %v1033 = vsel %vm1015, %v1005, 0.0
        %v1034 = vpack.c.bf16 %v1017, %v1016
        %v1035 = vpack.c.bf16 %v1019, %v1018
        %v1036 = vpack.c.bf16 %v1021, %v1020
        %v1037 = vpack.c.bf16 %v1023, %v1022
        %v1038 = vld [vmem:[#allocation5] sm:$0xf]
        %v1039 = vld [vmem:[#allocation5 + $0x4] sm:$0xf]
        %v1040 = vld [vmem:[#allocation5 + $0x8] sm:$0xf]
        %v1041 = vld [vmem:[#allocation5 + $0xc] sm:$0xf]
        %v1042 = vld [vmem:[#allocation5 + $0x10] sm:$0xf]
        %v1043 = vld [vmem:[#allocation5 + $0x14] sm:$0xf]
        %v1044 = vld [vmem:[#allocation5 + $0x18] sm:$0xf]
        %v1045 = vld [vmem:[#allocation5 + $0x1c] sm:$0xf]
        %v1046 = vld [vmem:[#allocation5 + $0x20] sm:$0xf]
        %v1047 = vld [vmem:[#allocation5 + $0x24] sm:$0xf]
        %v1048 = vld [vmem:[#allocation5 + $0x28] sm:$0xf]
        %v1049 = vld [vmem:[#allocation5 + $0x2c] sm:$0xf]
        %v1050 = vld [vmem:[#allocation5 + $0x30] sm:$0xf]
        %v1051 = vld [vmem:[#allocation5 + $0x34] sm:$0xf]
        %v1052 = vld [vmem:[#allocation5 + $0x38] sm:$0xf]
        %v1053 = vld [vmem:[#allocation5 + $0x3c] sm:$0xf]
        %v1070 = vrot.slane %v1016, 1
        %v1071 = vrot.slane %v1025, 1
        %v1072 = vsel %vm379, %v1070, %v1071
        %v1073 = vrot.slane %v1017, 1
        %v1074 = vrot.slane %v1026, 1
        %v1075 = vsel %vm379, %v1073, %v1074
        %v1076 = vrot.slane %v1018, 1
        %v1077 = vrot.slane %v1027, 1
        %v1078 = vsel %vm379, %v1076, %v1077
        %v1079 = vrot.slane %v1019, 1
        %v1080 = vrot.slane %v1028, 1
        %v1081 = vsel %vm379, %v1079, %v1080
        %v1082 = vrot.slane %v1020, 1
        %v1083 = vrot.slane %v1029, 1
        %v1084 = vsel %vm379, %v1082, %v1083
        %v1085 = vrot.slane %v1021, 1
        %v1086 = vrot.slane %v1030, 1
        %v1087 = vsel %vm379, %v1085, %v1086
        %v1088 = vrot.slane %v1022, 1
        %v1089 = vrot.slane %v1031, 1
        %v1090 = vsel %vm379, %v1088, %v1089
        %v1091 = vrot.slane %v1023, 1
        %v1092 = vrot.slane %v1032, 1
        %v1093 = vsel %vm379, %v1091, %v1092
        %v1102 = vpack.c.bf16 %v1075, %v1072
        %v1103 = vpack.c.bf16 %v1081, %v1078
        %v1104 = vpack.c.bf16 %v1087, %v1084
        %v1105 = vpack.c.bf16 %v1093, %v1090
        %s1106 = scalar_lea.vmem [#allocation5], 64
        %v1107 = vld [vmem:[%s1106] sm:$0xf]
        %v1108 = vld [vmem:[%s1106 + $0x4] sm:$0xf]
        %v1109 = vld [vmem:[%s1106 + $0x8] sm:$0xf]
        %v1110 = vld [vmem:[%s1106 + $0xc] sm:$0xf]
        %v1111 = vld [vmem:[%s1106 + $0x10] sm:$0xf]
        %v1112 = vld [vmem:[%s1106 + $0x14] sm:$0xf]
        %v1113 = vld [vmem:[%s1106 + $0x18] sm:$0xf]
        %v1114 = vld [vmem:[%s1106 + $0x1c] sm:$0xf]
        %v1115 = vld [vmem:[%s1106 + $0x20] sm:$0xf]
        %v1116 = vld [vmem:[%s1106 + $0x24] sm:$0xf]
        %v1117 = vld [vmem:[%s1106 + $0x28] sm:$0xf]
        %v1118 = vld [vmem:[%s1106 + $0x2c] sm:$0xf]
        %v1119 = vld [vmem:[%s1106 + $0x30] sm:$0xf]
        %v1120 = vld [vmem:[%s1106 + $0x34] sm:$0xf]
        %v1121 = vld [vmem:[%s1106 + $0x38] sm:$0xf]
        %v1122 = vld [vmem:[%s1106 + $0x3c] sm:$0xf]
        %v1139 = vunpack.c.l.b16 %v1107
        %v1140 = vunpack.c.l.b16 %v1108
        %v1141 = vunpack.c.l.b16 %v1109
        %v1142 = vunpack.c.l.b16 %v1110
        %v1143 = vunpack.c.l.b16 %v1111
        %v1144 = vunpack.c.l.b16 %v1112
        %v1145 = vunpack.c.l.b16 %v1113
        %v1146 = vunpack.c.l.b16 %v1114
        %v1147 = vunpack.c.l.b16 %v1115
        %v1148 = vunpack.c.l.b16 %v1116
        %v1149 = vunpack.c.l.b16 %v1117
        %v1150 = vunpack.c.l.b16 %v1118
        %v1151 = vunpack.c.l.b16 %v1119
        %v1152 = vunpack.c.l.b16 %v1120
        %v1153 = vunpack.c.l.b16 %v1121
        %v1154 = vunpack.c.l.b16 %v1122
        %v1155 = vpack.c.b16 %v1140, %v1139
        %v1156 = vpack.c.b16 %v1142, %v1141
        %v1157 = vpack.c.b16 %v1144, %v1143
        %v1158 = vpack.c.b16 %v1146, %v1145
        %v1159 = vpack.c.b16 %v1148, %v1147
        %v1160 = vpack.c.b16 %v1150, %v1149
        %v1161 = vpack.c.b16 %v1152, %v1151
        %v1162 = vpack.c.b16 %v1154, %v1153
        %1171 = vmatprep.subr.bf16.mxu0 0
        %1172 = vmatpush1.bf16.msra.mxu0 %v1155
        %1173 = vmatprep.subr.bf16.mxu0 0
        %1174 = vmatpush1.bf16.msra.mxu0 %v1156
        %1175 = vmatprep.subr.bf16.mxu0 0
        %1176 = vmatpush1.bf16.msra.mxu0 %v1157
        %1177 = vmatprep.subr.bf16.mxu0 0
        %1178 = vmatpush1.bf16.msra.mxu0 %v1158
        %1179 = vmatprep.subr.bf16.mxu0 0
        %1180 = vmatpush1.bf16.msra.mxu0 %v1159
        %1181 = vmatprep.subr.bf16.mxu0 0
        %1182 = vmatpush1.bf16.msra.mxu0 %v1160
        %1183 = vmatprep.subr.bf16.mxu0 0
        %1184 = vmatpush1.bf16.msra.mxu0 %v1161
        %1185 = vmatprep.subr.bf16.mxu0 0
        %1186 = vmatpush1.bf16.msra.mxu0 %v1162
        %1187 = vmatprep.subr.bf16.mxu0 0
        %1188 = vmatpush1.bf16.msra.mxu0 0
        %1189 = vmatprep.subr.bf16.mxu0 0
        %1190 = vmatpush1.bf16.msra.mxu0 0
        %1191 = vmatprep.subr.bf16.mxu0 0
        %1192 = vmatpush1.bf16.msra.mxu0 0
        %1193 = vmatprep.subr.bf16.mxu0 0
        %1194 = vmatpush1.bf16.msra.mxu0 0
        %1195 = vmatprep.subr.bf16.mxu0 0
        %1196 = vmatpush1.bf16.msra.mxu0 0
        %1197 = vmatprep.subr.bf16.mxu0 0
        %1198 = vmatpush1.bf16.msra.mxu0 0
        %1199 = vmatprep.subr.bf16.mxu0 0
        %1200 = vmatpush1.bf16.msra.mxu0 0
        %1201 = vmatprep.subr.bf16.mxu0 0
        %1202 = vmatpush1.bf16.msra.mxu0 0
        %1203 = vmatprep.mubr.bf16.mxu0 0
        %1204 = vmatmul.mubr.bf16.gmra.mrb[0].mxu0 %v1102
        %v1205 = vpop.f32.mrb[0].mxu0
        %v1206 = vadd.f32 0.0, %v1205
        %v1207 = vpop.f32.mrb[0].mxu0
        %v1208 = vpop.f32.mrb[0].mxu0
        %v1209 = vadd.f32 0.0, %v1208
        %v1210 = vpop.f32.mrb[0].mxu0
        %1211 = vmatprep.mubr.bf16.mxu0 0
        %1212 = vmatmul.mubr.bf16.gmra.mrb[0].mxu0 %v1103
        %v1213 = vpop.f32.mrb[0].mxu0
        %v1214 = vadd.f32 0.0, %v1213
        %v1215 = vpop.f32.mrb[0].mxu0
        %v1216 = vpop.f32.mrb[0].mxu0
        %v1217 = vadd.f32 0.0, %v1216
        %v1218 = vpop.f32.mrb[0].mxu0
        %1219 = vmatprep.mubr.bf16.mxu0 0
        %1220 = vmatmul.mubr.bf16.gmra.mrb[0].mxu0 %v1104
        %v1221 = vpop.f32.mrb[0].mxu0
        %v1222 = vadd.f32 0.0, %v1221
        %v1223 = vpop.f32.mrb[0].mxu0
        %v1224 = vpop.f32.mrb[0].mxu0
        %v1225 = vadd.f32 0.0, %v1224
        %v1226 = vpop.f32.mrb[0].mxu0
        %1227 = vmatprep.mubr.bf16.mxu0 0
        %1228 = vmatmul.mubr.bf16.gmra.mrb[0].mxu0 %v1105
        %v1229 = vpop.f32.mrb[0].mxu0
        %v1230 = vadd.f32 0.0, %v1229
        %v1231 = vpop.f32.mrb[0].mxu0
        %v1232 = vpop.f32.mrb[0].mxu0
        %v1233 = vadd.f32 0.0, %v1232
        %v1234 = vpop.f32.mrb[0].mxu0
        %1235 = vdwg.mxu0
        %v1252 = vunpack.c.l.b16 %v1038
        %v1253 = vunpack.c.l.b16 %v1039
        %v1254 = vunpack.c.l.b16 %v1040
        %v1255 = vunpack.c.l.b16 %v1041
        %v1256 = vunpack.c.l.b16 %v1042
        %v1257 = vunpack.c.l.b16 %v1043
        %v1258 = vunpack.c.l.b16 %v1044
        %v1259 = vunpack.c.l.b16 %v1045
        %v1260 = vunpack.c.l.b16 %v1046
        %v1261 = vunpack.c.l.b16 %v1047
        %v1262 = vunpack.c.l.b16 %v1048
        %v1263 = vunpack.c.l.b16 %v1049
        %v1264 = vunpack.c.l.b16 %v1050
        %v1265 = vunpack.c.l.b16 %v1051
        %v1266 = vunpack.c.l.b16 %v1052
        %v1267 = vunpack.c.l.b16 %v1053
        %v1268 = vpack.c.b16 %v1253, %v1252
        %v1269 = vpack.c.b16 %v1255, %v1254
        %v1270 = vpack.c.b16 %v1257, %v1256
        %v1271 = vpack.c.b16 %v1259, %v1258
        %v1272 = vpack.c.b16 %v1261, %v1260
        %v1273 = vpack.c.b16 %v1263, %v1262
        %v1274 = vpack.c.b16 %v1265, %v1264
        %v1275 = vpack.c.b16 %v1267, %v1266
        %1284 = vmatprep.subr.bf16.mxu0 0
        %1285 = vmatpush1.bf16.msra.mxu0 %v1268
        %1286 = vmatprep.subr.bf16.mxu0 0
        %1287 = vmatpush1.bf16.msra.mxu0 %v1269
        %1288 = vmatprep.subr.bf16.mxu0 0
        %1289 = vmatpush1.bf16.msra.mxu0 %v1270
        %1290 = vmatprep.subr.bf16.mxu0 0
        %1291 = vmatpush1.bf16.msra.mxu0 %v1271
        %1292 = vmatprep.subr.bf16.mxu0 0
        %1293 = vmatpush1.bf16.msra.mxu0 %v1272
        %1294 = vmatprep.subr.bf16.mxu0 0
        %1295 = vmatpush1.bf16.msra.mxu0 %v1273
        %1296 = vmatprep.subr.bf16.mxu0 0
        %1297 = vmatpush1.bf16.msra.mxu0 %v1274
        %1298 = vmatprep.subr.bf16.mxu0 0
        %1299 = vmatpush1.bf16.msra.mxu0 %v1275
        %1300 = vmatprep.subr.bf16.mxu0 0
        %1301 = vmatpush1.bf16.msra.mxu0 0
        %1302 = vmatprep.subr.bf16.mxu0 0
        %1303 = vmatpush1.bf16.msra.mxu0 0
        %1304 = vmatprep.subr.bf16.mxu0 0
        %1305 = vmatpush1.bf16.msra.mxu0 0
        %1306 = vmatprep.subr.bf16.mxu0 0
        %1307 = vmatpush1.bf16.msra.mxu0 0
        %1308 = vmatprep.subr.bf16.mxu0 0
        %1309 = vmatpush1.bf16.msra.mxu0 0
        %1310 = vmatprep.subr.bf16.mxu0 0
        %1311 = vmatpush1.bf16.msra.mxu0 0
        %1312 = vmatprep.subr.bf16.mxu0 0
        %1313 = vmatpush1.bf16.msra.mxu0 0
        %1314 = vmatprep.subr.bf16.mxu0 0
        %1315 = vmatpush1.bf16.msra.mxu0 0
        %1316 = vmatprep.mubr.bf16.mxu0 0
        %1317 = vmatmul.mubr.bf16.gmra.mrb[0].mxu0 %v1034
        %v1318 = vpop.f32.mrb[0].mxu0
        %v1319 = vadd.f32 %v1206, %v1318
        %v1320 = vpop.f32.mrb[0].mxu0
        %v1321 = vpop.f32.mrb[0].mxu0
        %v1322 = vadd.f32 %v1209, %v1321
        %v1323 = vpop.f32.mrb[0].mxu0
        %1324 = vmatprep.mubr.bf16.mxu0 0
        %1325 = vmatmul.mubr.bf16.gmra.mrb[0].mxu0 %v1035
        %v1326 = vpop.f32.mrb[0].mxu0
        %v1327 = vadd.f32 %v1214, %v1326
        %v1328 = vpop.f32.mrb[0].mxu0
        %v1329 = vpop.f32.mrb[0].mxu0
        %v1330 = vadd.f32 %v1217, %v1329
        %v1331 = vpop.f32.mrb[0].mxu0
        %1332 = vmatprep.mubr.bf16.mxu0 0
        %1333 = vmatmul.mubr.bf16.gmra.mrb[0].mxu0 %v1036
        %v1334 = vpop.f32.mrb[0].mxu0
        %v1335 = vadd.f32 %v1222, %v1334
        %v1336 = vpop.f32.mrb[0].mxu0
        %v1337 = vpop.f32.mrb[0].mxu0
        %v1338 = vadd.f32 %v1225, %v1337
        %v1339 = vpop.f32.mrb[0].mxu0
        %1340 = vmatprep.mubr.bf16.mxu0 0
        %1341 = vmatmul.mubr.bf16.gmra.mrb[0].mxu0 %v1037
        %v1342 = vpop.f32.mrb[0].mxu0
        %v1343 = vadd.f32 %v1230, %v1342
        %v1344 = vpop.f32.mrb[0].mxu0
        %v1345 = vpop.f32.mrb[0].mxu0
        %v1346 = vadd.f32 %v1233, %v1345
        %v1347 = vpop.f32.mrb[0].mxu0
        %1348 = vdwg.mxu0
        %vm1349 = vcmask 1045504
        %v1350 = vrot.slane %v1016, 2
        %v1351 = vrot.slane %v1025, 2
        %v1352 = vsel %vm1349, %v1350, %v1351
        %v1353 = vrot.slane %v1017, 2
        %v1354 = vrot.slane %v1026, 2
        %v1355 = vsel %vm1349, %v1353, %v1354
        %v1356 = vrot.slane %v1018, 2
        %v1357 = vrot.slane %v1027, 2
        %v1358 = vsel %vm1349, %v1356, %v1357
        %v1359 = vrot.slane %v1019, 2
        %v1360 = vrot.slane %v1028, 2
        %v1361 = vsel %vm1349, %v1359, %v1360
        %v1362 = vrot.slane %v1020, 2
        %v1363 = vrot.slane %v1029, 2
        %v1364 = vsel %vm1349, %v1362, %v1363
        %v1365 = vrot.slane %v1021, 2
        %v1366 = vrot.slane %v1030, 2
        %v1367 = vsel %vm1349, %v1365, %v1366
        %v1368 = vrot.slane %v1022, 2
        %v1369 = vrot.slane %v1031, 2
        %v1370 = vsel %vm1349, %v1368, %v1369
        %v1371 = vrot.slane %v1023, 2
        %v1372 = vrot.slane %v1032, 2
        %v1373 = vsel %vm1349, %v1371, %v1372
        %v1382 = vpack.c.bf16 %v1355, %v1352
        %v1383 = vpack.c.bf16 %v1361, %v1358
        %v1384 = vpack.c.bf16 %v1367, %v1364
        %v1385 = vpack.c.bf16 %v1373, %v1370
        %s1386 = scalar_lea.vmem [#allocation5], 128
        %v1387 = vld [vmem:[%s1386] sm:$0xf]
        %v1388 = vld [vmem:[%s1386 + $0x4] sm:$0xf]
        %v1389 = vld [vmem:[%s1386 + $0x8] sm:$0xf]
        %v1390 = vld [vmem:[%s1386 + $0xc] sm:$0xf]
        %v1391 = vld [vmem:[%s1386 + $0x10] sm:$0xf]
        %v1392 = vld [vmem:[%s1386 + $0x14] sm:$0xf]
        %v1393 = vld [vmem:[%s1386 + $0x18] sm:$0xf]
        %v1394 = vld [vmem:[%s1386 + $0x1c] sm:$0xf]
        %v1395 = vld [vmem:[%s1386 + $0x20] sm:$0xf]
        %v1396 = vld [vmem:[%s1386 + $0x24] sm:$0xf]
        %v1397 = vld [vmem:[%s1386 + $0x28] sm:$0xf]
        %v1398 = vld [vmem:[%s1386 + $0x2c] sm:$0xf]
        %v1399 = vld [vmem:[%s1386 + $0x30] sm:$0xf]
        %v1400 = vld [vmem:[%s1386 + $0x34] sm:$0xf]
        %v1401 = vld [vmem:[%s1386 + $0x38] sm:$0xf]
        %v1402 = vld [vmem:[%s1386 + $0x3c] sm:$0xf]
        %v1419 = vunpack.c.l.b16 %v1387
        %v1420 = vunpack.c.l.b16 %v1388
        %v1421 = vunpack.c.l.b16 %v1389
        %v1422 = vunpack.c.l.b16 %v1390
        %v1423 = vunpack.c.l.b16 %v1391
        %v1424 = vunpack.c.l.b16 %v1392
        %v1425 = vunpack.c.l.b16 %v1393
        %v1426 = vunpack.c.l.b16 %v1394
        %v1427 = vunpack.c.l.b16 %v1395
        %v1428 = vunpack.c.l.b16 %v1396
        %v1429 = vunpack.c.l.b16 %v1397
        %v1430 = vunpack.c.l.b16 %v1398
        %v1431 = vunpack.c.l.b16 %v1399
        %v1432 = vunpack.c.l.b16 %v1400
        %v1433 = vunpack.c.l.b16 %v1401
        %v1434 = vunpack.c.l.b16 %v1402
        %v1435 = vpack.c.b16 %v1420, %v1419
        %v1436 = vpack.c.b16 %v1422, %v1421
        %v1437 = vpack.c.b16 %v1424, %v1423
        %v1438 = vpack.c.b16 %v1426, %v1425
        %v1439 = vpack.c.b16 %v1428, %v1427
        %v1440 = vpack.c.b16 %v1430, %v1429
        %v1441 = vpack.c.b16 %v1432, %v1431
        %v1442 = vpack.c.b16 %v1434, %v1433
        %1451 = vmatprep.subr.bf16.mxu0 0
        %1452 = vmatpush1.bf16.msra.mxu0 %v1435
        %1453 = vmatprep.subr.bf16.mxu0 0
        %1454 = vmatpush1.bf16.msra.mxu0 %v1436
        %1455 = vmatprep.subr.bf16.mxu0 0
        %1456 = vmatpush1.bf16.msra.mxu0 %v1437
        %1457 = vmatprep.subr.bf16.mxu0 0
        %1458 = vmatpush1.bf16.msra.mxu0 %v1438
        %1459 = vmatprep.subr.bf16.mxu0 0
        %1460 = vmatpush1.bf16.msra.mxu0 %v1439
        %1461 = vmatprep.subr.bf16.mxu0 0
        %1462 = vmatpush1.bf16.msra.mxu0 %v1440
        %1463 = vmatprep.subr.bf16.mxu0 0
        %1464 = vmatpush1.bf16.msra.mxu0 %v1441
        %1465 = vmatprep.subr.bf16.mxu0 0
        %1466 = vmatpush1.bf16.msra.mxu0 %v1442
        %1467 = vmatprep.subr.bf16.mxu0 0
        %1468 = vmatpush1.bf16.msra.mxu0 0
        %1469 = vmatprep.subr.bf16.mxu0 0
        %1470 = vmatpush1.bf16.msra.mxu0 0
        %1471 = vmatprep.subr.bf16.mxu0 0
        %1472 = vmatpush1.bf16.msra.mxu0 0
        %1473 = vmatprep.subr.bf16.mxu0 0
        %1474 = vmatpush1.bf16.msra.mxu0 0
        %1475 = vmatprep.subr.bf16.mxu0 0
        %1476 = vmatpush1.bf16.msra.mxu0 0
        %1477 = vmatprep.subr.bf16.mxu0 0
        %1478 = vmatpush1.bf16.msra.mxu0 0
        %1479 = vmatprep.subr.bf16.mxu0 0
        %1480 = vmatpush1.bf16.msra.mxu0 0
        %1481 = vmatprep.subr.bf16.mxu0 0
        %1482 = vmatpush1.bf16.msra.mxu0 0
        %1483 = vmatprep.mubr.bf16.mxu0 0
        %1484 = vmatmul.mubr.bf16.gmra.mrb[0].mxu0 %v1382
        %v1485 = vpop.f32.mrb[0].mxu0
        %v1486 = vadd.f32 0.0, %v1485
        %v1487 = vpop.f32.mrb[0].mxu0
        %v1488 = vpop.f32.mrb[0].mxu0
        %v1489 = vadd.f32 0.0, %v1488
        %v1490 = vpop.f32.mrb[0].mxu0
        %1491 = vmatprep.mubr.bf16.mxu0 0
        %1492 = vmatmul.mubr.bf16.gmra.mrb[0].mxu0 %v1383
        %v1493 = vpop.f32.mrb[0].mxu0
        %v1494 = vadd.f32 0.0, %v1493
        %v1495 = vpop.f32.mrb[0].mxu0
        %v1496 = vpop.f32.mrb[0].mxu0
        %v1497 = vadd.f32 0.0, %v1496
        %v1498 = vpop.f32.mrb[0].mxu0
        %1499 = vmatprep.mubr.bf16.mxu0 0
        %1500 = vmatmul.mubr.bf16.gmra.mrb[0].mxu0 %v1384
        %v1501 = vpop.f32.mrb[0].mxu0
        %v1502 = vadd.f32 0.0, %v1501
        %v1503 = vpop.f32.mrb[0].mxu0
        %v1504 = vpop.f32.mrb[0].mxu0
        %v1505 = vadd.f32 0.0, %v1504
        %v1506 = vpop.f32.mrb[0].mxu0
        %1507 = vmatprep.mubr.bf16.mxu0 0
        %1508 = vmatmul.mubr.bf16.gmra.mrb[0].mxu0 %v1385
        %v1509 = vpop.f32.mrb[0].mxu0
        %v1510 = vadd.f32 0.0, %v1509
        %v1511 = vpop.f32.mrb[0].mxu0
        %v1512 = vpop.f32.mrb[0].mxu0
        %v1513 = vadd.f32 0.0, %v1512
        %v1514 = vpop.f32.mrb[0].mxu0
        %1515 = vdwg.mxu0
        %v1516 = vadd.f32 %v1319, %v1486
        %v1517 = vadd.f32 %v1322, %v1489
        %v1518 = vadd.f32 %v1327, %v1494
        %v1519 = vadd.f32 %v1330, %v1497
        %v1520 = vadd.f32 %v1335, %v1502
        %v1521 = vadd.f32 %v1338, %v1505
        %v1522 = vadd.f32 %v1343, %v1510
        %v1523 = vadd.f32 %v1346, %v1513
        %v1524 = vpack.c.bf16 %v1018, %v1017
        %v1525 = vpack.c.bf16 %v1020, %v1019
        %v1526 = vpack.c.bf16 %v1022, %v1021
        %v1527 = vpack.c.bf16 %v1024, %v1023
        %s1528 = scalar_lea.vmem [#allocation5], 192
        %v1529 = vld [vmem:[%s1528] sm:$0xf]
        %v1530 = vld [vmem:[%s1528 + $0x4] sm:$0xf]
        %v1531 = vld [vmem:[%s1528 + $0x8] sm:$0xf]
        %v1532 = vld [vmem:[%s1528 + $0xc] sm:$0xf]
        %v1533 = vld [vmem:[%s1528 + $0x10] sm:$0xf]
        %v1534 = vld [vmem:[%s1528 + $0x14] sm:$0xf]
        %v1535 = vld [vmem:[%s1528 + $0x18] sm:$0xf]
        %v1536 = vld [vmem:[%s1528 + $0x1c] sm:$0xf]
        %v1537 = vld [vmem:[%s1528 + $0x20] sm:$0xf]
        %v1538 = vld [vmem:[%s1528 + $0x24] sm:$0xf]
        %v1539 = vld [vmem:[%s1528 + $0x28] sm:$0xf]
        %v1540 = vld [vmem:[%s1528 + $0x2c] sm:$0xf]
        %v1541 = vld [vmem:[%s1528 + $0x30] sm:$0xf]
        %v1542 = vld [vmem:[%s1528 + $0x34] sm:$0xf]
        %v1543 = vld [vmem:[%s1528 + $0x38] sm:$0xf]
        %v1544 = vld [vmem:[%s1528 + $0x3c] sm:$0xf]
        %v1561 = vunpack.c.l.b16 %v1529
        %v1562 = vunpack.c.l.b16 %v1530
        %v1563 = vunpack.c.l.b16 %v1531
        %v1564 = vunpack.c.l.b16 %v1532
        %v1565 = vunpack.c.l.b16 %v1533
        %v1566 = vunpack.c.l.b16 %v1534
        %v1567 = vunpack.c.l.b16 %v1535
        %v1568 = vunpack.c.l.b16 %v1536
        %v1569 = vunpack.c.l.b16 %v1537
        %v1570 = vunpack.c.l.b16 %v1538
        %v1571 = vunpack.c.l.b16 %v1539
        %v1572 = vunpack.c.l.b16 %v1540
        %v1573 = vunpack.c.l.b16 %v1541
        %v1574 = vunpack.c.l.b16 %v1542
        %v1575 = vunpack.c.l.b16 %v1543
        %v1576 = vunpack.c.l.b16 %v1544
        %v1577 = vpack.c.b16 %v1562, %v1561
        %v1578 = vpack.c.b16 %v1564, %v1563
        %v1579 = vpack.c.b16 %v1566, %v1565
        %v1580 = vpack.c.b16 %v1568, %v1567
        %v1581 = vpack.c.b16 %v1570, %v1569
        %v1582 = vpack.c.b16 %v1572, %v1571
        %v1583 = vpack.c.b16 %v1574, %v1573
        %v1584 = vpack.c.b16 %v1576, %v1575
        %1593 = vmatprep.subr.bf16.mxu0 0
        %1594 = vmatpush1.bf16.msra.mxu0 %v1577
        %1595 = vmatprep.subr.bf16.mxu0 0
        %1596 = vmatpush1.bf16.msra.mxu0 %v1578
        %1597 = vmatprep.subr.bf16.mxu0 0
        %1598 = vmatpush1.bf16.msra.mxu0 %v1579
        %1599 = vmatprep.subr.bf16.mxu0 0
        %1600 = vmatpush1.bf16.msra.mxu0 %v1580
        %1601 = vmatprep.subr.bf16.mxu0 0
        %1602 = vmatpush1.bf16.msra.mxu0 %v1581
        %1603 = vmatprep.subr.bf16.mxu0 0
        %1604 = vmatpush1.bf16.msra.mxu0 %v1582
        %1605 = vmatprep.subr.bf16.mxu0 0
        %1606 = vmatpush1.bf16.msra.mxu0 %v1583
        %1607 = vmatprep.subr.bf16.mxu0 0
        %1608 = vmatpush1.bf16.msra.mxu0 %v1584
        %1609 = vmatprep.subr.bf16.mxu0 0
        %1610 = vmatpush1.bf16.msra.mxu0 0
        %1611 = vmatprep.subr.bf16.mxu0 0
        %1612 = vmatpush1.bf16.msra.mxu0 0
        %1613 = vmatprep.subr.bf16.mxu0 0
        %1614 = vmatpush1.bf16.msra.mxu0 0
        %1615 = vmatprep.subr.bf16.mxu0 0
        %1616 = vmatpush1.bf16.msra.mxu0 0
        %1617 = vmatprep.subr.bf16.mxu0 0
        %1618 = vmatpush1.bf16.msra.mxu0 0
        %1619 = vmatprep.subr.bf16.mxu0 0
        %1620 = vmatpush1.bf16.msra.mxu0 0
        %1621 = vmatprep.subr.bf16.mxu0 0
        %1622 = vmatpush1.bf16.msra.mxu0 0
        %1623 = vmatprep.subr.bf16.mxu0 0
        %1624 = vmatpush1.bf16.msra.mxu0 0
        %1625 = vmatprep.mubr.bf16.mxu0 0
        %1626 = vmatmul.mubr.bf16.gmra.mrb[0].mxu0 %v1524
        %v1627 = vpop.f32.mrb[0].mxu0
        %v1628 = vadd.f32 0.0, %v1627
        %v1629 = vpop.f32.mrb[0].mxu0
        %v1630 = vpop.f32.mrb[0].mxu0
        %v1631 = vadd.f32 0.0, %v1630
        %v1632 = vpop.f32.mrb[0].mxu0
        %1633 = vmatprep.mubr.bf16.mxu0 0
        %1634 = vmatmul.mubr.bf16.gmra.mrb[0].mxu0 %v1525
        %v1635 = vpop.f32.mrb[0].mxu0
        %v1636 = vadd.f32 0.0, %v1635
        %v1637 = vpop.f32.mrb[0].mxu0
        %v1638 = vpop.f32.mrb[0].mxu0
        %v1639 = vadd.f32 0.0, %v1638
        %v1640 = vpop.f32.mrb[0].mxu0
        %1641 = vmatprep.mubr.bf16.mxu0 0
        %1642 = vmatmul.mubr.bf16.gmra.mrb[0].mxu0 %v1526
        %v1643 = vpop.f32.mrb[0].mxu0
        %v1644 = vadd.f32 0.0, %v1643
        %v1645 = vpop.f32.mrb[0].mxu0
        %v1646 = vpop.f32.mrb[0].mxu0
        %v1647 = vadd.f32 0.0, %v1646
        %v1648 = vpop.f32.mrb[0].mxu0
        %1649 = vmatprep.mubr.bf16.mxu0 0
        %1650 = vmatmul.mubr.bf16.gmra.mrb[0].mxu0 %v1527
        %v1651 = vpop.f32.mrb[0].mxu0
        %v1652 = vadd.f32 0.0, %v1651
        %v1653 = vpop.f32.mrb[0].mxu0
        %v1654 = vpop.f32.mrb[0].mxu0
        %v1655 = vadd.f32 0.0, %v1654
        %v1656 = vpop.f32.mrb[0].mxu0
        %1657 = vdwg.mxu0
        %v1658 = vadd.f32 %v1516, %v1628
        %v1659 = vadd.f32 %v1517, %v1631
        %v1660 = vadd.f32 %v1518, %v1636
        %v1661 = vadd.f32 %v1519, %v1639
        %v1662 = vadd.f32 %v1520, %v1644
        %v1663 = vadd.f32 %v1521, %v1647
        %v1664 = vadd.f32 %v1522, %v1652
        %v1665 = vadd.f32 %v1523, %v1655
        %v1668 = vrot.slane %v1024, 1
        %v1669 = vrot.slane %v1033, 1
        %v1670 = vsel %vm379, %v1668, %v1669
        %v1672 = vpack.c.bf16 %v1078, %v1075
        %v1673 = vpack.c.bf16 %v1084, %v1081
        %v1674 = vpack.c.bf16 %v1090, %v1087
        %v1675 = vpack.c.bf16 %v1670, %v1093
        %s1676 = scalar_lea.vmem [#allocation5], 256
        %v1677 = vld [vmem:[%s1676] sm:$0xf]
        %v1678 = vld [vmem:[%s1676 + $0x4] sm:$0xf]
        %v1679 = vld [vmem:[%s1676 + $0x8] sm:$0xf]
        %v1680 = vld [vmem:[%s1676 + $0xc] sm:$0xf]
        %v1681 = vld [vmem:[%s1676 + $0x10] sm:$0xf]
        %v1682 = vld [vmem:[%s1676 + $0x14] sm:$0xf]
        %v1683 = vld [vmem:[%s1676 + $0x18] sm:$0xf]
        %v1684 = vld [vmem:[%s1676 + $0x1c] sm:$0xf]
        %v1685 = vld [vmem:[%s1676 + $0x20] sm:$0xf]
        %v1686 = vld [vmem:[%s1676 + $0x24] sm:$0xf]
        %v1687 = vld [vmem:[%s1676 + $0x28] sm:$0xf]
        %v1688 = vld [vmem:[%s1676 + $0x2c] sm:$0xf]
        %v1689 = vld [vmem:[%s1676 + $0x30] sm:$0xf]
        %v1690 = vld [vmem:[%s1676 + $0x34] sm:$0xf]
        %v1691 = vld [vmem:[%s1676 + $0x38] sm:$0xf]
        %v1692 = vld [vmem:[%s1676 + $0x3c] sm:$0xf]
        %v1709 = vunpack.c.l.b16 %v1677
        %v1710 = vunpack.c.l.b16 %v1678
        %v1711 = vunpack.c.l.b16 %v1679
        %v1712 = vunpack.c.l.b16 %v1680
        %v1713 = vunpack.c.l.b16 %v1681
        %v1714 = vunpack.c.l.b16 %v1682
        %v1715 = vunpack.c.l.b16 %v1683
        %v1716 = vunpack.c.l.b16 %v1684
        %v1717 = vunpack.c.l.b16 %v1685
        %v1718 = vunpack.c.l.b16 %v1686
        %v1719 = vunpack.c.l.b16 %v1687
        %v1720 = vunpack.c.l.b16 %v1688
        %v1721 = vunpack.c.l.b16 %v1689
        %v1722 = vunpack.c.l.b16 %v1690
        %v1723 = vunpack.c.l.b16 %v1691
        %v1724 = vunpack.c.l.b16 %v1692
        %v1725 = vpack.c.b16 %v1710, %v1709
        %v1726 = vpack.c.b16 %v1712, %v1711
        %v1727 = vpack.c.b16 %v1714, %v1713
        %v1728 = vpack.c.b16 %v1716, %v1715
        %v1729 = vpack.c.b16 %v1718, %v1717
        %v1730 = vpack.c.b16 %v1720, %v1719
        %v1731 = vpack.c.b16 %v1722, %v1721
        %v1732 = vpack.c.b16 %v1724, %v1723
        %1741 = vmatprep.subr.bf16.mxu0 0
        %1742 = vmatpush1.bf16.msra.mxu0 %v1725
        %1743 = vmatprep.subr.bf16.mxu0 0
        %1744 = vmatpush1.bf16.msra.mxu0 %v1726
        %1745 = vmatprep.subr.bf16.mxu0 0
        %1746 = vmatpush1.bf16.msra.mxu0 %v1727
        %1747 = vmatprep.subr.bf16.mxu0 0
        %1748 = vmatpush1.bf16.msra.mxu0 %v1728
        %1749 = vmatprep.subr.bf16.mxu0 0
        %1750 = vmatpush1.bf16.msra.mxu0 %v1729
        %1751 = vmatprep.subr.bf16.mxu0 0
        %1752 = vmatpush1.bf16.msra.mxu0 %v1730
        %1753 = vmatprep.subr.bf16.mxu0 0
        %1754 = vmatpush1.bf16.msra.mxu0 %v1731
        %1755 = vmatprep.subr.bf16.mxu0 0
        %1756 = vmatpush1.bf16.msra.mxu0 %v1732
        %1757 = vmatprep.subr.bf16.mxu0 0
        %1758 = vmatpush1.bf16.msra.mxu0 0
        %1759 = vmatprep.subr.bf16.mxu0 0
        %1760 = vmatpush1.bf16.msra.mxu0 0
        %1761 = vmatprep.subr.bf16.mxu0 0
        %1762 = vmatpush1.bf16.msra.mxu0 0
        %1763 = vmatprep.subr.bf16.mxu0 0
        %1764 = vmatpush1.bf16.msra.mxu0 0
        %1765 = vmatprep.subr.bf16.mxu0 0
        %1766 = vmatpush1.bf16.msra.mxu0 0
        %1767 = vmatprep.subr.bf16.mxu0 0
        %1768 = vmatpush1.bf16.msra.mxu0 0
        %1769 = vmatprep.subr.bf16.mxu0 0
        %1770 = vmatpush1.bf16.msra.mxu0 0
        %1771 = vmatprep.subr.bf16.mxu0 0
        %1772 = vmatpush1.bf16.msra.mxu0 0
        %1773 = vmatprep.mubr.bf16.mxu0 0
        %1774 = vmatmul.mubr.bf16.gmra.mrb[0].mxu0 %v1672
        %v1775 = vpop.f32.mrb[0].mxu0
        %v1776 = vadd.f32 0.0, %v1775
        %v1777 = vpop.f32.mrb[0].mxu0
        %v1778 = vpop.f32.mrb[0].mxu0
        %v1779 = vadd.f32 0.0, %v1778
        %v1780 = vpop.f32.mrb[0].mxu0
        %1781 = vmatprep.mubr.bf16.mxu0 0
        %1782 = vmatmul.mubr.bf16.gmra.mrb[0].mxu0 %v1673
        %v1783 = vpop.f32.mrb[0].mxu0
        %v1784 = vadd.f32 0.0, %v1783
        %v1785 = vpop.f32.mrb[0].mxu0
        %v1786 = vpop.f32.mrb[0].mxu0
        %v1787 = vadd.f32 0.0, %v1786
        %v1788 = vpop.f32.mrb[0].mxu0
        %1789 = vmatprep.mubr.bf16.mxu0 0
        %1790 = vmatmul.mubr.bf16.gmra.mrb[0].mxu0 %v1674
        %v1791 = vpop.f32.mrb[0].mxu0
        %v1792 = vadd.f32 0.0, %v1791
        %v1793 = vpop.f32.mrb[0].mxu0
        %v1794 = vpop.f32.mrb[0].mxu0
        %v1795 = vadd.f32 0.0, %v1794
        %v1796 = vpop.f32.mrb[0].mxu0
        %1797 = vmatprep.mubr.bf16.mxu0 0
        %1798 = vmatmul.mubr.bf16.gmra.mrb[0].mxu0 %v1675
        %v1799 = vpop.f32.mrb[0].mxu0
        %v1800 = vadd.f32 0.0, %v1799
        %v1801 = vpop.f32.mrb[0].mxu0
        %v1802 = vpop.f32.mrb[0].mxu0
        %v1803 = vadd.f32 0.0, %v1802
        %v1804 = vpop.f32.mrb[0].mxu0
        %1805 = vdwg.mxu0
        %v1806 = vadd.f32 %v1658, %v1776
        %v1807 = vadd.f32 %v1659, %v1779
        %v1808 = vadd.f32 %v1660, %v1784
        %v1809 = vadd.f32 %v1661, %v1787
        %v1810 = vadd.f32 %v1662, %v1792
        %v1811 = vadd.f32 %v1663, %v1795
        %v1812 = vadd.f32 %v1664, %v1800
        %v1813 = vadd.f32 %v1665, %v1803
        %v1814 = vrot.slane %v1024, 2
        %v1815 = vrot.slane %v1033, 2
        %v1816 = vsel %vm1349, %v1814, %v1815
        %v1818 = vpack.c.bf16 %v1358, %v1355
        %v1819 = vpack.c.bf16 %v1364, %v1361
        %v1820 = vpack.c.bf16 %v1370, %v1367
        %v1821 = vpack.c.bf16 %v1816, %v1373
        %s1822 = scalar_lea.vmem [#allocation5], 320
        %v1823 = vld [vmem:[%s1822] sm:$0xf]
        %v1824 = vld [vmem:[%s1822 + $0x4] sm:$0xf]
        %v1825 = vld [vmem:[%s1822 + $0x8] sm:$0xf]
        %v1826 = vld [vmem:[%s1822 + $0xc] sm:$0xf]
        %v1827 = vld [vmem:[%s1822 + $0x10] sm:$0xf]
        %v1828 = vld [vmem:[%s1822 + $0x14] sm:$0xf]
        %v1829 = vld [vmem:[%s1822 + $0x18] sm:$0xf]
        %v1830 = vld [vmem:[%s1822 + $0x1c] sm:$0xf]
        %v1831 = vld [vmem:[%s1822 + $0x20] sm:$0xf]
        %v1832 = vld [vmem:[%s1822 + $0x24] sm:$0xf]
        %v1833 = vld [vmem:[%s1822 + $0x28] sm:$0xf]
        %v1834 = vld [vmem:[%s1822 + $0x2c] sm:$0xf]
        %v1835 = vld [vmem:[%s1822 + $0x30] sm:$0xf]
        %v1836 = vld [vmem:[%s1822 + $0x34] sm:$0xf]
        %v1837 = vld [vmem:[%s1822 + $0x38] sm:$0xf]
        %v1838 = vld [vmem:[%s1822 + $0x3c] sm:$0xf]
        %v1855 = vunpack.c.l.b16 %v1823
        %v1856 = vunpack.c.l.b16 %v1824
        %v1857 = vunpack.c.l.b16 %v1825
        %v1858 = vunpack.c.l.b16 %v1826
        %v1859 = vunpack.c.l.b16 %v1827
        %v1860 = vunpack.c.l.b16 %v1828
        %v1861 = vunpack.c.l.b16 %v1829
        %v1862 = vunpack.c.l.b16 %v1830
        %v1863 = vunpack.c.l.b16 %v1831
        %v1864 = vunpack.c.l.b16 %v1832
        %v1865 = vunpack.c.l.b16 %v1833
        %v1866 = vunpack.c.l.b16 %v1834
        %v1867 = vunpack.c.l.b16 %v1835
        %v1868 = vunpack.c.l.b16 %v1836
        %v1869 = vunpack.c.l.b16 %v1837
        %v1870 = vunpack.c.l.b16 %v1838
        %v1871 = vpack.c.b16 %v1856, %v1855
        %v1872 = vpack.c.b16 %v1858, %v1857
        %v1873 = vpack.c.b16 %v1860, %v1859
        %v1874 = vpack.c.b16 %v1862, %v1861
        %v1875 = vpack.c.b16 %v1864, %v1863
        %v1876 = vpack.c.b16 %v1866, %v1865
        %v1877 = vpack.c.b16 %v1868, %v1867
        %v1878 = vpack.c.b16 %v1870, %v1869
        %1887 = vmatprep.subr.bf16.mxu0 0
        %1888 = vmatpush1.bf16.msra.mxu0 %v1871
        %1889 = vmatprep.subr.bf16.mxu0 0
        %1890 = vmatpush1.bf16.msra.mxu0 %v1872
        %1891 = vmatprep.subr.bf16.mxu0 0
        %1892 = vmatpush1.bf16.msra.mxu0 %v1873
        %1893 = vmatprep.subr.bf16.mxu0 0
        %1894 = vmatpush1.bf16.msra.mxu0 %v1874
        %1895 = vmatprep.subr.bf16.mxu0 0
        %1896 = vmatpush1.bf16.msra.mxu0 %v1875
        %1897 = vmatprep.subr.bf16.mxu0 0
        %1898 = vmatpush1.bf16.msra.mxu0 %v1876
        %1899 = vmatprep.subr.bf16.mxu0 0
        %1900 = vmatpush1.bf16.msra.mxu0 %v1877
        %1901 = vmatprep.subr.bf16.mxu0 0
        %1902 = vmatpush1.bf16.msra.mxu0 %v1878
        %1903 = vmatprep.subr.bf16.mxu0 0
        %1904 = vmatpush1.bf16.msra.mxu0 0
        %1905 = vmatprep.subr.bf16.mxu0 0
        %1906 = vmatpush1.bf16.msra.mxu0 0
        %1907 = vmatprep.subr.bf16.mxu0 0
        %1908 = vmatpush1.bf16.msra.mxu0 0
        %1909 = vmatprep.subr.bf16.mxu0 0
        %1910 = vmatpush1.bf16.msra.mxu0 0
        %1911 = vmatprep.subr.bf16.mxu0 0
        %1912 = vmatpush1.bf16.msra.mxu0 0
        %1913 = vmatprep.subr.bf16.mxu0 0
        %1914 = vmatpush1.bf16.msra.mxu0 0
        %1915 = vmatprep.subr.bf16.mxu0 0
        %1916 = vmatpush1.bf16.msra.mxu0 0
        %1917 = vmatprep.subr.bf16.mxu0 0
        %1918 = vmatpush1.bf16.msra.mxu0 0
        %1919 = vmatprep.mubr.bf16.mxu0 0
        %1920 = vmatmul.mubr.bf16.gmra.mrb[0].mxu0 %v1818
        %v1921 = vpop.f32.mrb[0].mxu0
        %v1922 = vadd.f32 0.0, %v1921
        %v1923 = vpop.f32.mrb[0].mxu0
        %v1924 = vpop.f32.mrb[0].mxu0
        %v1925 = vadd.f32 0.0, %v1924
        %v1926 = vpop.f32.mrb[0].mxu0
        %1927 = vmatprep.mubr.bf16.mxu0 0
        %1928 = vmatmul.mubr.bf16.gmra.mrb[0].mxu0 %v1819
        %v1929 = vpop.f32.mrb[0].mxu0
        %v1930 = vadd.f32 0.0, %v1929
        %v1931 = vpop.f32.mrb[0].mxu0
        %v1932 = vpop.f32.mrb[0].mxu0
        %v1933 = vadd.f32 0.0, %v1932
        %v1934 = vpop.f32.mrb[0].mxu0
        %1935 = vmatprep.mubr.bf16.mxu0 0
        %1936 = vmatmul.mubr.bf16.gmra.mrb[0].mxu0 %v1820
        %v1937 = vpop.f32.mrb[0].mxu0
        %v1938 = vadd.f32 0.0, %v1937
        %v1939 = vpop.f32.mrb[0].mxu0
        %v1940 = vpop.f32.mrb[0].mxu0
        %v1941 = vadd.f32 0.0, %v1940
        %v1942 = vpop.f32.mrb[0].mxu0
        %1943 = vmatprep.mubr.bf16.mxu0 0
        %1944 = vmatmul.mubr.bf16.gmra.mrb[0].mxu0 %v1821
        %v1945 = vpop.f32.mrb[0].mxu0
        %v1946 = vadd.f32 0.0, %v1945
        %v1947 = vpop.f32.mrb[0].mxu0
        %v1948 = vpop.f32.mrb[0].mxu0
        %v1949 = vadd.f32 0.0, %v1948
        %v1950 = vpop.f32.mrb[0].mxu0
        %1951 = vdwg.mxu0
        %v1952 = vadd.f32 %v1806, %v1922
        %v1953 = vadd.f32 %v1807, %v1925
        %v1954 = vadd.f32 %v1808, %v1930
        %v1955 = vadd.f32 %v1809, %v1933
        %v1956 = vadd.f32 %v1810, %v1938
        %v1957 = vadd.f32 %v1811, %v1941
        %v1958 = vadd.f32 %v1812, %v1946
        %v1959 = vadd.f32 %v1813, %v1949
        %v1960 = vpack.c.bf16 %v1016, %v1024
        %s1961 = scalar_lea.vmem [#allocation5], 384
        %v1962 = vld [vmem:[%s1961] sm:$0xf]
        %v1963 = vld [vmem:[%s1961 + $0x4] sm:$0xf]
        %v1964 = vld [vmem:[%s1961 + $0x8] sm:$0xf]
        %v1965 = vld [vmem:[%s1961 + $0xc] sm:$0xf]
        %v1966 = vld [vmem:[%s1961 + $0x10] sm:$0xf]
        %v1967 = vld [vmem:[%s1961 + $0x14] sm:$0xf]
        %v1968 = vld [vmem:[%s1961 + $0x18] sm:$0xf]
        %v1969 = vld [vmem:[%s1961 + $0x1c] sm:$0xf]
        %v1970 = vld [vmem:[%s1961 + $0x20] sm:$0xf]
        %v1971 = vld [vmem:[%s1961 + $0x24] sm:$0xf]
        %v1972 = vld [vmem:[%s1961 + $0x28] sm:$0xf]
        %v1973 = vld [vmem:[%s1961 + $0x2c] sm:$0xf]
        %v1974 = vld [vmem:[%s1961 + $0x30] sm:$0xf]
        %v1975 = vld [vmem:[%s1961 + $0x34] sm:$0xf]
        %v1976 = vld [vmem:[%s1961 + $0x38] sm:$0xf]
        %v1977 = vld [vmem:[%s1961 + $0x3c] sm:$0xf]
        %v1994 = vunpack.c.l.b16 %v1962
        %v1995 = vunpack.c.l.b16 %v1963
        %v1996 = vunpack.c.l.b16 %v1964
        %v1997 = vunpack.c.l.b16 %v1965
        %v1998 = vunpack.c.l.b16 %v1966
        %v1999 = vunpack.c.l.b16 %v1967
        %v2000 = vunpack.c.l.b16 %v1968
        %v2001 = vunpack.c.l.b16 %v1969
        %v2002 = vunpack.c.l.b16 %v1970
        %v2003 = vunpack.c.l.b16 %v1971
        %v2004 = vunpack.c.l.b16 %v1972
        %v2005 = vunpack.c.l.b16 %v1973
        %v2006 = vunpack.c.l.b16 %v1974
        %v2007 = vunpack.c.l.b16 %v1975
        %v2008 = vunpack.c.l.b16 %v1976
        %v2009 = vunpack.c.l.b16 %v1977
        %v2010 = vpack.c.b16 %v1995, %v1994
        %v2011 = vpack.c.b16 %v1997, %v1996
        %v2012 = vpack.c.b16 %v1999, %v1998
        %v2013 = vpack.c.b16 %v2001, %v2000
        %v2014 = vpack.c.b16 %v2003, %v2002
        %v2015 = vpack.c.b16 %v2005, %v2004
        %v2016 = vpack.c.b16 %v2007, %v2006
        %v2017 = vpack.c.b16 %v2009, %v2008
        %2026 = vmatprep.subr.bf16.mxu0 0
        %2027 = vmatpush1.bf16.msra.mxu0 %v2010
        %2028 = vmatprep.subr.bf16.mxu0 0
        %2029 = vmatpush1.bf16.msra.mxu0 %v2011
        %2030 = vmatprep.subr.bf16.mxu0 0
        %2031 = vmatpush1.bf16.msra.mxu0 %v2012
        %2032 = vmatprep.subr.bf16.mxu0 0
        %2033 = vmatpush1.bf16.msra.mxu0 %v2013
        %2034 = vmatprep.subr.bf16.mxu0 0
        %2035 = vmatpush1.bf16.msra.mxu0 %v2014
        %2036 = vmatprep.subr.bf16.mxu0 0
        %2037 = vmatpush1.bf16.msra.mxu0 %v2015
        %2038 = vmatprep.subr.bf16.mxu0 0
        %2039 = vmatpush1.bf16.msra.mxu0 %v2016
        %2040 = vmatprep.subr.bf16.mxu0 0
        %2041 = vmatpush1.bf16.msra.mxu0 %v2017
        %2042 = vmatprep.subr.bf16.mxu0 0
        %2043 = vmatpush1.bf16.msra.mxu0 0
        %2044 = vmatprep.subr.bf16.mxu0 0
        %2045 = vmatpush1.bf16.msra.mxu0 0
        %2046 = vmatprep.subr.bf16.mxu0 0
        %2047 = vmatpush1.bf16.msra.mxu0 0
        %2048 = vmatprep.subr.bf16.mxu0 0
        %2049 = vmatpush1.bf16.msra.mxu0 0
        %2050 = vmatprep.subr.bf16.mxu0 0
        %2051 = vmatpush1.bf16.msra.mxu0 0
        %2052 = vmatprep.subr.bf16.mxu0 0
        %2053 = vmatpush1.bf16.msra.mxu0 0
        %2054 = vmatprep.subr.bf16.mxu0 0
        %2055 = vmatpush1.bf16.msra.mxu0 0
        %2056 = vmatprep.subr.bf16.mxu0 0
        %2057 = vmatpush1.bf16.msra.mxu0 0
        %2058 = vmatprep.mubr.bf16.mxu0 0
        %2059 = vmatmul.mubr.bf16.gmra.mrb[0].mxu0 %v1035
        %v2060 = vpop.f32.mrb[0].mxu0
        %v2061 = vadd.f32 0.0, %v2060
        %v2062 = vpop.f32.mrb[0].mxu0
        %v2063 = vpop.f32.mrb[0].mxu0
        %v2064 = vadd.f32 0.0, %v2063
        %v2065 = vpop.f32.mrb[0].mxu0
        %2066 = vmatprep.mubr.bf16.mxu0 0
        %2067 = vmatmul.mubr.bf16.gmra.mrb[0].mxu0 %v1036
        %v2068 = vpop.f32.mrb[0].mxu0
        %v2069 = vadd.f32 0.0, %v2068
        %v2070 = vpop.f32.mrb[0].mxu0
        %v2071 = vpop.f32.mrb[0].mxu0
        %v2072 = vadd.f32 0.0, %v2071
        %v2073 = vpop.f32.mrb[0].mxu0
        %2074 = vmatprep.mubr.bf16.mxu0 0
        %2075 = vmatmul.mubr.bf16.gmra.mrb[0].mxu0 %v1037
        %v2076 = vpop.f32.mrb[0].mxu0
        %v2077 = vadd.f32 0.0, %v2076
        %v2078 = vpop.f32.mrb[0].mxu0
        %v2079 = vpop.f32.mrb[0].mxu0
        %v2080 = vadd.f32 0.0, %v2079
        %v2081 = vpop.f32.mrb[0].mxu0
        %2082 = vmatprep.mubr.bf16.mxu0 0
        %2083 = vmatmul.mubr.bf16.gmra.mrb[0].mxu0 %v1960
        %v2084 = vpop.f32.mrb[0].mxu0
        %v2085 = vadd.f32 0.0, %v2084
        %v2086 = vpop.f32.mrb[0].mxu0
        %v2087 = vpop.f32.mrb[0].mxu0
        %v2088 = vadd.f32 0.0, %v2087
        %v2089 = vpop.f32.mrb[0].mxu0
        %2090 = vdwg.mxu0
        %v2091 = vadd.f32 %v1952, %v2061
        %v2092 = vadd.f32 %v1953, %v2064
        %v2093 = vadd.f32 %v1954, %v2069
        %v2094 = vadd.f32 %v1955, %v2072
        %v2095 = vadd.f32 %v1956, %v2077
        %v2096 = vadd.f32 %v1957, %v2080
        %v2097 = vadd.f32 %v1958, %v2085
        %v2098 = vadd.f32 %v1959, %v2088
        %v2099 = vpack.c.bf16 %v1072, %v1670
        %s2100 = scalar_lea.vmem [#allocation5], 448
        %v2101 = vld [vmem:[%s2100] sm:$0xf]
        %v2102 = vld [vmem:[%s2100 + $0x4] sm:$0xf]
        %v2103 = vld [vmem:[%s2100 + $0x8] sm:$0xf]
        %v2104 = vld [vmem:[%s2100 + $0xc] sm:$0xf]
        %v2105 = vld [vmem:[%s2100 + $0x10] sm:$0xf]
        %v2106 = vld [vmem:[%s2100 + $0x14] sm:$0xf]
        %v2107 = vld [vmem:[%s2100 + $0x18] sm:$0xf]
        %v2108 = vld [vmem:[%s2100 + $0x1c] sm:$0xf]
        %v2109 = vld [vmem:[%s2100 + $0x20] sm:$0xf]
        %v2110 = vld [vmem:[%s2100 + $0x24] sm:$0xf]
        %v2111 = vld [vmem:[%s2100 + $0x28] sm:$0xf]
        %v2112 = vld [vmem:[%s2100 + $0x2c] sm:$0xf]
        %v2113 = vld [vmem:[%s2100 + $0x30] sm:$0xf]
        %v2114 = vld [vmem:[%s2100 + $0x34] sm:$0xf]
        %v2115 = vld [vmem:[%s2100 + $0x38] sm:$0xf]
        %v2116 = vld [vmem:[%s2100 + $0x3c] sm:$0xf]
        %v2133 = vunpack.c.l.b16 %v2101
        %v2134 = vunpack.c.l.b16 %v2102
        %v2135 = vunpack.c.l.b16 %v2103
        %v2136 = vunpack.c.l.b16 %v2104
        %v2137 = vunpack.c.l.b16 %v2105
        %v2138 = vunpack.c.l.b16 %v2106
        %v2139 = vunpack.c.l.b16 %v2107
        %v2140 = vunpack.c.l.b16 %v2108
        %v2141 = vunpack.c.l.b16 %v2109
        %v2142 = vunpack.c.l.b16 %v2110
        %v2143 = vunpack.c.l.b16 %v2111
        %v2144 = vunpack.c.l.b16 %v2112
        %v2145 = vunpack.c.l.b16 %v2113
        %v2146 = vunpack.c.l.b16 %v2114
        %v2147 = vunpack.c.l.b16 %v2115
        %v2148 = vunpack.c.l.b16 %v2116
        %v2149 = vpack.c.b16 %v2134, %v2133
        %v2150 = vpack.c.b16 %v2136, %v2135
        %v2151 = vpack.c.b16 %v2138, %v2137
        %v2152 = vpack.c.b16 %v2140, %v2139
        %v2153 = vpack.c.b16 %v2142, %v2141
        %v2154 = vpack.c.b16 %v2144, %v2143
        %v2155 = vpack.c.b16 %v2146, %v2145
        %v2156 = vpack.c.b16 %v2148, %v2147
        %2165 = vmatprep.subr.bf16.mxu0 0
        %2166 = vmatpush1.bf16.msra.mxu0 %v2149
        %2167 = vmatprep.subr.bf16.mxu0 0
        %2168 = vmatpush1.bf16.msra.mxu0 %v2150
        %2169 = vmatprep.subr.bf16.mxu0 0
        %2170 = vmatpush1.bf16.msra.mxu0 %v2151
        %2171 = vmatprep.subr.bf16.mxu0 0
        %2172 = vmatpush1.bf16.msra.mxu0 %v2152
        %2173 = vmatprep.subr.bf16.mxu0 0
        %2174 = vmatpush1.bf16.msra.mxu0 %v2153
        %2175 = vmatprep.subr.bf16.mxu0 0
        %2176 = vmatpush1.bf16.msra.mxu0 %v2154
        %2177 = vmatprep.subr.bf16.mxu0 0
        %2178 = vmatpush1.bf16.msra.mxu0 %v2155
        %2179 = vmatprep.subr.bf16.mxu0 0
        %2180 = vmatpush1.bf16.msra.mxu0 %v2156
        %2181 = vmatprep.subr.bf16.mxu0 0
        %2182 = vmatpush1.bf16.msra.mxu0 0
        %2183 = vmatprep.subr.bf16.mxu0 0
        %2184 = vmatpush1.bf16.msra.mxu0 0
        %2185 = vmatprep.subr.bf16.mxu0 0
        %2186 = vmatpush1.bf16.msra.mxu0 0
        %2187 = vmatprep.subr.bf16.mxu0 0
        %2188 = vmatpush1.bf16.msra.mxu0 0
        %2189 = vmatprep.subr.bf16.mxu0 0
        %2190 = vmatpush1.bf16.msra.mxu0 0
        %2191 = vmatprep.subr.bf16.mxu0 0
        %2192 = vmatpush1.bf16.msra.mxu0 0
        %2193 = vmatprep.subr.bf16.mxu0 0
        %2194 = vmatpush1.bf16.msra.mxu0 0
        %2195 = vmatprep.subr.bf16.mxu0 0
        %2196 = vmatpush1.bf16.msra.mxu0 0
        %2197 = vmatprep.mubr.bf16.mxu0 0
        %2198 = vmatmul.mubr.bf16.gmra.mrb[0].mxu0 %v1103
        %v2199 = vpop.f32.mrb[0].mxu0
        %v2200 = vadd.f32 0.0, %v2199
        %v2201 = vpop.f32.mrb[0].mxu0
        %v2202 = vpop.f32.mrb[0].mxu0
        %v2203 = vadd.f32 0.0, %v2202
        %v2204 = vpop.f32.mrb[0].mxu0
        %2205 = vmatprep.mubr.bf16.mxu0 0
        %2206 = vmatmul.mubr.bf16.gmra.mrb[0].mxu0 %v1104
        %v2207 = vpop.f32.mrb[0].mxu0
        %v2208 = vadd.f32 0.0, %v2207
        %v2209 = vpop.f32.mrb[0].mxu0
        %v2210 = vpop.f32.mrb[0].mxu0
        %v2211 = vadd.f32 0.0, %v2210
        %v2212 = vpop.f32.mrb[0].mxu0
        %2213 = vmatprep.mubr.bf16.mxu0 0
        %2214 = vmatmul.mubr.bf16.gmra.mrb[0].mxu0 %v1105
        %v2215 = vpop.f32.mrb[0].mxu0
        %v2216 = vadd.f32 0.0, %v2215
        %v2217 = vpop.f32.mrb[0].mxu0
        %v2218 = vpop.f32.mrb[0].mxu0
        %v2219 = vadd.f32 0.0, %v2218
        %v2220 = vpop.f32.mrb[0].mxu0
        %2221 = vmatprep.mubr.bf16.mxu0 0
        %2222 = vmatmul.mubr.bf16.gmra.mrb[0].mxu0 %v2099
        %v2223 = vpop.f32.mrb[0].mxu0
        %v2224 = vadd.f32 0.0, %v2223
        %v2225 = vpop.f32.mrb[0].mxu0
        %v2226 = vpop.f32.mrb[0].mxu0
        %v2227 = vadd.f32 0.0, %v2226
        %v2228 = vpop.f32.mrb[0].mxu0
        %2229 = vdwg.mxu0
        %v2230 = vadd.f32 %v2091, %v2200
        %v2231 = vadd.f32 %v2092, %v2203
        %v2232 = vadd.f32 %v2093, %v2208
        %v2233 = vadd.f32 %v2094, %v2211
        %v2234 = vadd.f32 %v2095, %v2216
        %v2235 = vadd.f32 %v2096, %v2219
        %v2236 = vadd.f32 %v2097, %v2224
        %v2237 = vadd.f32 %v2098, %v2227
        %v2238 = vpack.c.bf16 %v1352, %v1816
        %s2239 = scalar_lea.vmem [#allocation5], 512
        %v2240 = vld [vmem:[%s2239] sm:$0xf]
        %v2241 = vld [vmem:[%s2239 + $0x4] sm:$0xf]
        %v2242 = vld [vmem:[%s2239 + $0x8] sm:$0xf]
        %v2243 = vld [vmem:[%s2239 + $0xc] sm:$0xf]
        %v2244 = vld [vmem:[%s2239 + $0x10] sm:$0xf]
        %v2245 = vld [vmem:[%s2239 + $0x14] sm:$0xf]
        %v2246 = vld [vmem:[%s2239 + $0x18] sm:$0xf]
        %v2247 = vld [vmem:[%s2239 + $0x1c] sm:$0xf]
        %v2248 = vld [vmem:[%s2239 + $0x20] sm:$0xf]
        %v2249 = vld [vmem:[%s2239 + $0x24] sm:$0xf]
        %v2250 = vld [vmem:[%s2239 + $0x28] sm:$0xf]
        %v2251 = vld [vmem:[%s2239 + $0x2c] sm:$0xf]
        %v2252 = vld [vmem:[%s2239 + $0x30] sm:$0xf]
        %v2253 = vld [vmem:[%s2239 + $0x34] sm:$0xf]
        %v2254 = vld [vmem:[%s2239 + $0x38] sm:$0xf]
        %v2255 = vld [vmem:[%s2239 + $0x3c] sm:$0xf]
        %v2272 = vunpack.c.l.b16 %v2240
        %v2273 = vunpack.c.l.b16 %v2241
        %v2274 = vunpack.c.l.b16 %v2242
        %v2275 = vunpack.c.l.b16 %v2243
        %v2276 = vunpack.c.l.b16 %v2244
        %v2277 = vunpack.c.l.b16 %v2245
        %v2278 = vunpack.c.l.b16 %v2246
        %v2279 = vunpack.c.l.b16 %v2247
        %v2280 = vunpack.c.l.b16 %v2248
        %v2281 = vunpack.c.l.b16 %v2249
        %v2282 = vunpack.c.l.b16 %v2250
        %v2283 = vunpack.c.l.b16 %v2251
        %v2284 = vunpack.c.l.b16 %v2252
        %v2285 = vunpack.c.l.b16 %v2253
        %v2286 = vunpack.c.l.b16 %v2254
        %v2287 = vunpack.c.l.b16 %v2255
        %v2288 = vpack.c.b16 %v2273, %v2272
        %v2289 = vpack.c.b16 %v2275, %v2274
        %v2290 = vpack.c.b16 %v2277, %v2276
        %v2291 = vpack.c.b16 %v2279, %v2278
        %v2292 = vpack.c.b16 %v2281, %v2280
        %v2293 = vpack.c.b16 %v2283, %v2282
        %v2294 = vpack.c.b16 %v2285, %v2284
        %v2295 = vpack.c.b16 %v2287, %v2286
        %2304 = vmatprep.subr.bf16.mxu0 0
        %2305 = vmatpush1.bf16.msra.mxu0 %v2288
        %2306 = vmatprep.subr.bf16.mxu0 0
        %2307 = vmatpush1.bf16.msra.mxu0 %v2289
        %2308 = vmatprep.subr.bf16.mxu0 0
        %2309 = vmatpush1.bf16.msra.mxu0 %v2290
        %2310 = vmatprep.subr.bf16.mxu0 0
        %2311 = vmatpush1.bf16.msra.mxu0 %v2291
        %2312 = vmatprep.subr.bf16.mxu0 0
        %2313 = vmatpush1.bf16.msra.mxu0 %v2292
        %2314 = vmatprep.subr.bf16.mxu0 0
        %2315 = vmatpush1.bf16.msra.mxu0 %v2293
        %2316 = vmatprep.subr.bf16.mxu0 0
        %2317 = vmatpush1.bf16.msra.mxu0 %v2294
        %2318 = vmatprep.subr.bf16.mxu0 0
        %2319 = vmatpush1.bf16.msra.mxu0 %v2295
        %2320 = vmatprep.subr.bf16.mxu0 0
        %2321 = vmatpush1.bf16.msra.mxu0 0
        %2322 = vmatprep.subr.bf16.mxu0 0
        %2323 = vmatpush1.bf16.msra.mxu0 0
        %2324 = vmatprep.subr.bf16.mxu0 0
        %2325 = vmatpush1.bf16.msra.mxu0 0
        %2326 = vmatprep.subr.bf16.mxu0 0
        %2327 = vmatpush1.bf16.msra.mxu0 0
        %2328 = vmatprep.subr.bf16.mxu0 0
        %2329 = vmatpush1.bf16.msra.mxu0 0
        %2330 = vmatprep.subr.bf16.mxu0 0
        %2331 = vmatpush1.bf16.msra.mxu0 0
        %2332 = vmatprep.subr.bf16.mxu0 0
        %2333 = vmatpush1.bf16.msra.mxu0 0
        %2334 = vmatprep.subr.bf16.mxu0 0
        %2335 = vmatpush1.bf16.msra.mxu0 0
        %2336 = vmatprep.mubr.bf16.mxu0 0
        %2337 = vmatmul.mubr.bf16.gmra.mrb[0].mxu0 %v1383
        %v2338 = vpop.f32.mrb[0].mxu0
        %v2339 = vadd.f32 0.0, %v2338
        %v2340 = vpop.f32.mrb[0].mxu0
        %v2341 = vpop.f32.mrb[0].mxu0
        %v2342 = vadd.f32 0.0, %v2341
        %v2343 = vpop.f32.mrb[0].mxu0
        %2344 = vmatprep.mubr.bf16.mxu0 0
        %2345 = vmatmul.mubr.bf16.gmra.mrb[0].mxu0 %v1384
        %v2346 = vpop.f32.mrb[0].mxu0
        %v2347 = vadd.f32 0.0, %v2346
        %v2348 = vpop.f32.mrb[0].mxu0
        %v2349 = vpop.f32.mrb[0].mxu0
        %v2350 = vadd.f32 0.0, %v2349
        %v2351 = vpop.f32.mrb[0].mxu0
        %2352 = vmatprep.mubr.bf16.mxu0 0
        %2353 = vmatmul.mubr.bf16.gmra.mrb[0].mxu0 %v1385
        %v2354 = vpop.f32.mrb[0].mxu0
        %v2355 = vadd.f32 0.0, %v2354
        %v2356 = vpop.f32.mrb[0].mxu0
        %v2357 = vpop.f32.mrb[0].mxu0
        %v2358 = vadd.f32 0.0, %v2357
        %v2359 = vpop.f32.mrb[0].mxu0
        %2360 = vmatprep.mubr.bf16.mxu0 0
        %2361 = vmatmul.mubr.bf16.gmra.mrb[0].mxu0 %v2238
        %v2362 = vpop.f32.mrb[0].mxu0
        %v2363 = vadd.f32 0.0, %v2362
        %v2364 = vpop.f32.mrb[0].mxu0
        %v2365 = vpop.f32.mrb[0].mxu0
        %v2366 = vadd.f32 0.0, %v2365
        %v2367 = vpop.f32.mrb[0].mxu0
        %2368 = vdwg.mxu0
        %v2369 = vadd.f32 %v2230, %v2339
        %v2370 = vadd.f32 %v2231, %v2342
        %v2371 = vadd.f32 %v2232, %v2347
        %v2372 = vadd.f32 %v2233, %v2350
        %v2373 = vadd.f32 %v2234, %v2355
        %v2374 = vadd.f32 %v2235, %v2358
        %v2375 = vadd.f32 %v2236, %v2363
        %v2376 = vadd.f32 %v2237, %v2366
        %v2377 = vld [vmem:[%s4] sm:$0x1]
        %v2379 = vlaneseq
        %v2380 = vshrl.u32 %v2379, 7
        %v2381 = vsub.s32 0, %v2380
        %v2382 = vrot.slane %v2377, %v2381
        %v2384 = vadd.f32 %v2369, %v2382
        %v2385 = vadd.f32 %v2370, %v2382
        %v2386 = vadd.f32 %v2371, %v2382
        %v2387 = vadd.f32 %v2372, %v2382
        %v2388 = vadd.f32 %v2373, %v2382
        %v2389 = vadd.f32 %v2374, %v2382
        %v2390 = vadd.f32 %v2375, %v2382
        %v2391 = vadd.f32 %v2376, %v2382
        %vm2392 = vcmp.ge.f32.partialorder %v2384, 0.0
        %vm2393 = vcmp.ge.f32.partialorder %v2385, 0.0
        %vm2394 = vcmp.ge.f32.partialorder %v2386, 0.0
        %vm2395 = vcmp.ge.f32.partialorder %v2387, 0.0
        %vm2396 = vcmp.ge.f32.partialorder %v2388, 0.0
        %vm2397 = vcmp.ge.f32.partialorder %v2389, 0.0
        %vm2398 = vcmp.ge.f32.partialorder %v2390, 0.0
        %vm2399 = vcmp.ge.f32.partialorder %v2391, 0.0
        %v2400 = vmul.f32 %v2384, 0.2
        %v2401 = vmul.f32 %v2385, 0.2
        %v2402 = vmul.f32 %v2386, 0.2
        %v2403 = vmul.f32 %v2387, 0.2
        %v2404 = vmul.f32 %v2388, 0.2
        %v2405 = vmul.f32 %v2389, 0.2
        %v2406 = vmul.f32 %v2390, 0.2
        %v2407 = vmul.f32 %v2391, 0.2
        %v2408 = vsel %vm2392, %v2384, %v2400
        %v2409 = vsel %vm2393, %v2385, %v2401
        %v2410 = vsel %vm2394, %v2386, %v2402
        %v2411 = vsel %vm2395, %v2387, %v2403
        %v2412 = vsel %vm2396, %v2388, %v2404
        %v2413 = vsel %vm2397, %v2389, %v2405
        %v2414 = vsel %vm2398, %v2390, %v2406
        %v2415 = vsel %vm2399, %v2391, %v2407
        %v2416 = vld [vmem:[%s5] sm:$0xff]
        %v2417 = vld [vmem:[%s5 + $0x8] sm:$0xff]
        %v2418 = vld [vmem:[%s5 + $0x10] sm:$0xff]
        %v2419 = vld [vmem:[%s5 + $0x18] sm:$0xff]
        %v2420 = vld [vmem:[%s5 + $0x20] sm:$0xff]
        %v2421 = vld [vmem:[%s5 + $0x28] sm:$0xff]
        %v2422 = vld [vmem:[%s5 + $0x30] sm:$0xff]
        %v2423 = vld [vmem:[%s5 + $0x38] sm:$0xff]
        %v2424 = vmul.f32 %v2408, %v2416
        %v2425 = vmul.f32 %v2409, %v2417
        %v2426 = vmul.f32 %v2410, %v2418
        %v2427 = vmul.f32 %v2411, %v2419
        %v2428 = vmul.f32 %v2412, %v2420
        %v2429 = vmul.f32 %v2413, %v2421
        %v2430 = vmul.f32 %v2414, %v2422
        %v2431 = vmul.f32 %v2415, %v2423
        %2432 = vadd.xlane.f32.xlu0 %v2424
        %v2433 = vpop.xlane.xlu0 %2432
        %2434 = vadd.xlane.f32.xlu0 %v2425
        %v2435 = vpop.xlane.xlu0 %2434
        %2436 = vadd.xlane.f32.xlu0 %v2426
        %v2437 = vpop.xlane.xlu0 %2436
        %2438 = vadd.xlane.f32.xlu0 %v2427
        %v2439 = vpop.xlane.xlu0 %2438
        %2440 = vadd.xlane.f32.xlu0 %v2428
        %v2441 = vpop.xlane.xlu0 %2440
        %2442 = vadd.xlane.f32.xlu0 %v2429
        %v2443 = vpop.xlane.xlu0 %2442
        %2444 = vadd.xlane.f32.xlu0 %v2430
        %v2445 = vpop.xlane.xlu0 %2444
        %2446 = vadd.xlane.f32.xlu0 %v2431
        %v2447 = vpop.xlane.xlu0 %2446
        %v2448 = vadd.f32 %v2433, %v2435
        %v2449 = vadd.f32 %v2448, %v2437
        %v2450 = vadd.f32 %v2449, %v2439
        %v2451 = vadd.f32 %v2450, %v2441
        %v2452 = vadd.f32 %v2451, %v2443
        %v2453 = vadd.f32 %v2452, %v2445
        %v2454 = vadd.f32 %v2453, %v2447
        %v2455 = vrot.slane %v2454, 4
        %v2456 = vadd.f32 %v2454, %v2455
        %v2457 = vrot.slane %v2456, 2
        %v2458 = vadd.f32 %v2456, %v2457
        %v2459 = vrot.slane %v2458, 1
        %v2460 = vadd.f32 %v2458, %v2459
        %s2461 = scalar_lea.vmem %s5, 64
        %v2462 = vld [vmem:[%s2461] sm:$0xff]
        %v2463 = vld [vmem:[%s2461 + $0x8] sm:$0xff]
        %v2464 = vld [vmem:[%s2461 + $0x10] sm:$0xff]
        %v2465 = vld [vmem:[%s2461 + $0x18] sm:$0xff]
        %v2466 = vld [vmem:[%s2461 + $0x20] sm:$0xff]
        %v2467 = vld [vmem:[%s2461 + $0x28] sm:$0xff]
        %v2468 = vld [vmem:[%s2461 + $0x30] sm:$0xff]
        %v2469 = vld [vmem:[%s2461 + $0x38] sm:$0xff]
        %v2470 = vmul.f32 %v2408, %v2462
        %v2471 = vmul.f32 %v2409, %v2463
        %v2472 = vmul.f32 %v2410, %v2464
        %v2473 = vmul.f32 %v2411, %v2465
        %v2474 = vmul.f32 %v2412, %v2466
        %v2475 = vmul.f32 %v2413, %v2467
        %v2476 = vmul.f32 %v2414, %v2468
        %v2477 = vmul.f32 %v2415, %v2469
        %2478 = vadd.xlane.f32.xlu0 %v2470
        %v2479 = vpop.xlane.xlu0 %2478
        %2480 = vadd.xlane.f32.xlu0 %v2471
        %v2481 = vpop.xlane.xlu0 %2480
        %2482 = vadd.xlane.f32.xlu0 %v2472
        %v2483 = vpop.xlane.xlu0 %2482
        %2484 = vadd.xlane.f32.xlu0 %v2473
        %v2485 = vpop.xlane.xlu0 %2484
        %2486 = vadd.xlane.f32.xlu0 %v2474
        %v2487 = vpop.xlane.xlu0 %2486
        %2488 = vadd.xlane.f32.xlu0 %v2475
        %v2489 = vpop.xlane.xlu0 %2488
        %2490 = vadd.xlane.f32.xlu0 %v2476
        %v2491 = vpop.xlane.xlu0 %2490
        %2492 = vadd.xlane.f32.xlu0 %v2477
        %v2493 = vpop.xlane.xlu0 %2492
        %v2494 = vadd.f32 %v2479, %v2481
        %v2495 = vadd.f32 %v2494, %v2483
        %v2496 = vadd.f32 %v2495, %v2485
        %v2497 = vadd.f32 %v2496, %v2487
        %v2498 = vadd.f32 %v2497, %v2489
        %v2499 = vadd.f32 %v2498, %v2491
        %v2500 = vadd.f32 %v2499, %v2493
        %v2501 = vrot.slane %v2500, 4
        %v2502 = vadd.f32 %v2500, %v2501
        %v2503 = vrot.slane %v2502, 2
        %v2504 = vadd.f32 %v2502, %v2503
        %v2505 = vrot.slane %v2504, 1
        %v2506 = vadd.f32 %v2504, %v2505
        %v2507 = vlaneseq
        %v2508 = vand.u32 %v2507, 127
        %vm2509 = vcmp.eq.s32.totalorder %v2508, 0
        %v2510 = vsel %vm2509, %v2460, %v2506
        %v2511 = vld [vmem:[%s6] sm:$0x1]
        %v2512 = vadd.f32 %v2510, %v2511
        %v2513 = vxor.u32 %v2512, 2147483648
        %v2514 = vmul.f32 %v2513, 1.442695
        %v2515 = vpow.pop %v2514
        %v2516 = vadd.f32 %v2515, 1.0
        %v2517 = vrcp.pop %v2516
        %v2518 = vmul.f32 1.0, %v2517
        %vm2519 = vcmask 8192
        %2520 = vst.msk [vmem:[%s300] sm:$0x1] %vm2519, %v2518
        %s2521 = sand.u32 %s183, 1
        %s2522 = scalar_lea.sflag [#allocation4], %s2521
        %s2523 = sand.u32 %s183, 1
        %s2524 = scalar_lea.vmem [#allocation7], %s2523
        // Predicated region
        $region57: #{tpu_custom_call.1} parent=47 // pred_check
          %p2525 = pneg %p193
        $region58: #{tpu_custom_call.1} parent=47 // pred_check_branch
          %2527 = sbr.rel (%p2525) target = $region60
        $region59: #{tpu_custom_call.1} parent=47 // pred_region
          %s2529 = ssub.s32 16, 16
          %2530 = vsyncadd %s2522, %s2529
          %s2531 = smul.addr %s23, 16
          %s2532 = scalar_lea.hbm %s7, %s2531
          %s2534 = sshll.u32 %s2524, 4
          %s2535 = int_to_ptr.vmem [resolvable:$true] %s2534
          %2537 = dma.vmem_to_hbm [thread:$0]  %s2535, 16, %s2532, %s2522
        $region60: #{tpu_custom_call.1} parent=47 // pred_fallthru
          _
      $region48: #{tpu_custom_call.1} parent=5 // pred_fallthru
        _
      %p2538 = scmp.le.s32.totalorder 2, %s18
      // Predicated region
      $region61: #{tpu_custom_call.1} parent=5 // pred_check
        %p2539 = pneg %p2538
      $region62: #{tpu_custom_call.1} parent=5 // pred_check_branch
        %2541 = sbr.rel (%p2539) target = $region64
      $region63: #{tpu_custom_call.1} parent=5 // pred_region
        %s2542 = ssub.s32 %s18, 2
        // Predicated region
        $region65: #{tpu_custom_call.1} parent=63 // pred_check
          %p2543 = pneg %p199
        $region66: #{tpu_custom_call.1} parent=63 // pred_check_branch
          %2545 = sbr.rel (%p2543) target = $region68
        $region67: #{tpu_custom_call.1} parent=63 // pred_region
          %s2546 = sand.u32 %s184, 1
          %s2547 = scalar_lea.sflag [#allocation4], %s2546
          %s2548 = sand.u32 %s184, 1
          %s2549 = scalar_lea.vmem [#allocation7], %s2548
          %2550 = dma.done %s2547, 16
        $region68: #{tpu_custom_call.1} parent=63 // pred_fallthru
          _
      $region64: #{tpu_custom_call.1} parent=5 // pred_fallthru
        _
    $region6: #{tpu_custom_call.1} parent=1 // loop_footer
      %s22 = sadd.s32 1, %s18
    $region7: #{tpu_custom_call.1} parent=1 // loop_footer_branch
      %17 = sbr.rel target = $region3
    $region8: #{tpu_custom_call.1} parent=1 // loop_exit
      _
    %2551 = vsyncpa [#allocation3], 1
    %s2552 = scalar_lea.sflag [#allocation3], 1
    %2553 = vsyncpa %s2552, 1
    %2554 = vsyncpa [#allocation6], 1
    %2555 = vsyncpa [#allocation4], 1
    %s2556 = scalar_lea.sflag [#allocation4], 1
    %2557 = vsyncpa %s2556, 1

</llo_original>
